<compile_context>
chip_gen: v6e
topology: v6e:2x2x1
jax: 0.10.0
libtpu: 0.0.40
codegen_flags: <defaults>
</compile_context>

<pallas_src>
import functools

import jax
import jax.numpy as jnp
from jax.experimental import pallas as pl
from jax.experimental.pallas import tpu as pltpu


# ---------------------------------------------------------------------------
# helpers
# ---------------------------------------------------------------------------
def _round_up(n: int, m: int) -> int:
    return ((n + m - 1) // m) * m


def _choose_row_tile(m: int, max_tile: int = 512) -> int:
    """Prefer big row tiles (each grid step costs ~0.35us), but keep >= 2 grid
    steps when there are enough rows so v7x's two TensorCores both get work."""
    m8 = _round_up(max(m, 8), 8)
    if m8 >= 2 * max_tile:
        return max_tile
    if m8 <= 8:
        return 8
    return min(max_tile, _round_up(m8 // 2, 8))


def _vmem_limit_bytes(tm: int, din: int, c: int, compute_dtype, out_dtype) -> int:
    """Rough double-buffered VMEM footprint with generous margin, clamped so it is
    valid on every generation (>= 32 MiB, < v7x's 64 MiB physical VMEM)."""
    lane = lambda n: _round_up(max(n, 1), 128)
    sub = lambda n: _round_up(max(n, 1), 8)
    ib = jnp.dtype(compute_dtype).itemsize
    ob = jnp.dtype(out_dtype).itemsize
    per_buf = (
        sub(tm) * lane(din) * ib          # x row tile
        + 4 * sub(din) * lane(c) * ib     # W1 (4 groups, resident)
        + sub(c) * lane(c) * ib           # gamma-folded W2 (resident)
        + 8 * lane(c) * 4                 # folded bias (f32)
        + 4 * sub(tm) * lane(c) * ob      # output tile (4 groups)
    )
    need = 2 * per_buf                    # double buffering
    return int(min(max(4 * need, 32 * 1024 * 1024), 60 * 1024 * 1024))


# ---------------------------------------------------------------------------
# fused kernel: linear1 (4 shuffle groups) + LayerNorm + linear2
# ---------------------------------------------------------------------------
def _upsample_fused_kernel(x_ref, w1_ref, w2_ref, b2_ref, o_ref, *, eps):
    """
    x_ref : (tm, Din)    compute dtype   source-token rows
    w1_ref: (4, Din, C)  compute dtype   linear1 weight split into 4 shuffle groups
    w2_ref: (C, C)       compute dtype   gamma folded into linear2 weight
    b2_ref: (1, C)       float32         beta @ W2 (folded LN bias)
    o_ref : (4, tm, C)   output dtype    per-group outputs (dense row stores)
    """
    x = x_ref[...]
    w2 = w2_ref[...]
    b2 = b2_ref[...].astype(jnp.float32)

    for q in range(4):  # static unroll: 4 output tokens per source token
        # linear1, channel group q (MXU, f32 accumulation)
        y = jnp.dot(x, w1_ref[q], preferred_element_type=jnp.float32)   # (tm, C) f32
        # one-pass LayerNorm statistics in f32: var = E[y^2] - E[y]^2
        m = jnp.mean(y, axis=-1, keepdims=True)
        s = jnp.mean(y * y, axis=-1, keepdims=True)
        inv = jax.lax.rsqrt(s - m * m + eps)
        yn = ((y - m) * inv).astype(w2.dtype)
        # linear2 with LN affine folded into the weight/bias (MXU, f32 accumulation)
        out = jnp.dot(yn, w2, preferred_element_type=jnp.float32) + b2
        o_ref[q] = out.astype(o_ref.dtype)


# ---------------------------------------------------------------------------
# UpSample2D forward (mirrors the PyTorch module)
# ---------------------------------------------------------------------------
def upsample2d_forward(
    x,
    params,
    *,
    n_lat,
    n_lon,
    lat_crop=(0, 0),
    lon_crop=(0, 0),
    eps=1e-5,
    compute_dtype=jnp.bfloat16,
    max_row_tile=512,
):
    """
    x: (B, n_lat*n_lon, input_dim)
    params:
        w1: (input_dim, 4*output_dim)   == linear1.weight.T
        w2: (output_dim, output_dim)    == linear2.weight.T
        gamma, beta: (output_dim,)      == norm.weight, norm.bias
    returns: (B, n_lat_out*n_lon_out, output_dim) after 2x lat/lon upsample + crop
    """
    B, N, din = x.shape
    assert N == n_lat * n_lon
    w1, w2 = params["w1"], params["w2"]
    gamma, beta = params["gamma"], params["beta"]
    C = w2.shape[0]
    assert w1.shape == (din, 4 * C) and w2.shape == (C, C)
    out_dtype = x.dtype
    cdt = jnp.dtype(compute_dtype)

    # --- weight prep (tiny, once per call): split W1 into the 4 shuffle groups,
    #     fold the LayerNorm affine into linear2 -------------------------------
    w1_g = jnp.transpose(w1.reshape(din, 4, C), (1, 0, 2)).astype(cdt)           # (4, Din, C)
    w2_f = (gamma[:, None].astype(jnp.float32) * w2.astype(jnp.float32)).astype(cdt)  # (C, C)
    b2_f = (beta.astype(jnp.float32) @ w2.astype(jnp.float32)).reshape(1, C)          # (1, C) f32

    # --- row tiling: zero-pad tokens up to a large tile multiple --------------
    m1 = B * N
    tm = _choose_row_tile(m1, max_row_tile)
    mp = _round_up(m1, tm)
    x2d = x.reshape(m1, din).astype(cdt)
    if mp != m1:
        x2d = jnp.pad(x2d, ((0, mp - m1), (0, 0)))   # zero rows -> finite LN, sliced off below

    out = pl.pallas_call(
        functools.partial(_upsample_fused_kernel, eps=eps),
        out_shape=jax.ShapeDtypeStruct((4, mp, C), out_dtype),
        grid_spec=pltpu.PrefetchScalarGridSpec(
            num_scalar_prefetch=0,
            grid=(mp // tm,),
            in_specs=[
                pl.BlockSpec((tm, din), lambda i: (i, 0)),        # x row tile
                pl.BlockSpec((4, din, C), lambda i: (0, 0, 0)),   # W1 groups (resident)
                pl.BlockSpec((C, C), lambda i: (0, 0)),           # gamma*W2  (resident)
                pl.BlockSpec((1, C), lambda i: (0, 0)),           # beta@W2   (resident)
            ],
            out_specs=pl.BlockSpec((4, tm, C), lambda i: (0, i, 0)),
        ),
        compiler_params=pltpu.CompilerParams(
            dimension_semantics=("parallel",),
            vmem_limit_bytes=_vmem_limit_bytes(tm, din, C, cdt, out_dtype),
        ),
    )(x2d, w1_g, w2_f, b2_f)

    # --- pixel-shuffle + crop on the FINAL tensor (single XLA transpose) ------
    out = out[:, :m1, :]
    out = out.reshape(2, 2, B, n_lat, n_lon, C)        # (r_lat, r_lon, B, lat, lon, C)
    out = jnp.transpose(out, (2, 3, 0, 4, 1, 5))       # (B, lat, r_lat, lon, r_lon, C)
    out = out.reshape(B, 2 * n_lat, 2 * n_lon, C)
    out = out[
        :,
        lat_crop[0] : -lat_crop[1] or None,
        lon_crop[0] : -lon_crop[1] or None,
        :,
    ]
    return out.reshape(B, -1, C)


# ---------------------------------------------------------------------------
# pure-JAX reference (high precision) for the self-check
# ---------------------------------------------------------------------------
def upsample2d_reference(x, params, *, n_lat, n_lon, lat_crop, lon_crop, eps=1e-5):
    B = x.shape[0]
    w1, w2 = params["w1"], params["w2"]
    gamma, beta = params["gamma"], params["beta"]
    C = w2.shape[0]
    hp = jax.lax.Precision.HIGHEST
    y = jnp.dot(x, w1, precision=hp)
    y = y.reshape(B, n_lat, n_lon, 2, 2, C)
    y = jnp.transpose(y, (0, 1, 3, 2, 4, 5))
    y = y.reshape(B, n_lat * 2, n_lon * 2, C)
    y = y[
        :,
        lat_crop[0] : -lat_crop[1] or None,
        lon_crop[0] : -lon_crop[1] or None,
        :,
    ]
    y = y.reshape(B, -1, C)
    mean = jnp.mean(y, axis=-1, keepdims=True)
    var = jnp.mean(jnp.square(y - mean), axis=-1, keepdims=True)
    y = (y - mean) * jax.lax.rsqrt(var + eps) * gamma + beta
    return jnp.dot(y, w2, precision=hp)


if __name__ == "__main__":
    # Small synthetic configuration consistent with the module's forward.
    B = 2
    input_dim = 32
    output_dim = 32
    n_lat, n_lon = 4, 8
    lat_crop, lon_crop = (0, 1), (0, 0)

    key = jax.random.PRNGKey(0)
    kx, k1, k2, kg, kb = jax.random.split(key, 5)
    x = jax.random.normal(kx, (B, n_lat * n_lon, input_dim), dtype=jnp.float32)
    params = {
        "w1": 0.05 * jax.random.normal(k1, (input_dim, 4 * output_dim), dtype=jnp.float32),
        "w2": 0.05 * jax.random.normal(k2, (output_dim, output_dim), dtype=jnp.float32),
        "gamma": 1.0 + 0.1 * jax.random.normal(kg, (output_dim,), dtype=jnp.float32),
        "beta": 0.1 * jax.random.normal(kb, (output_dim,), dtype=jnp.float32),
    }

    fwd = functools.partial(
        upsample2d_forward, n_lat=n_lat, n_lon=n_lon, lat_crop=lat_crop, lon_crop=lon_crop
    )
    ref = upsample2d_reference(
        x, params, n_lat=n_lat, n_lon=n_lon, lat_crop=lat_crop, lon_crop=lon_crop
    )

    # f32 MXU operands: tight check.
    out_f32 = jax.jit(functools.partial(fwd, compute_dtype=jnp.float32))(x, params)
    out_f32 = jax.block_until_ready(out_f32)
    # bf16 MXU operands (v6e/v7x fast path): looser check, LN stats / accum stay f32.
    out_bf16 = jax.jit(functools.partial(fwd, compute_dtype=jnp.bfloat16))(x, params)
    out_bf16 = jax.block_until_ready(out_bf16)

    expect = (B, (2 * n_lat - 1) * (2 * n_lon), output_dim)
    assert out_f32.shape == expect, out_f32.shape
    assert out_bf16.shape == expect, out_bf16.shape
    assert jnp.allclose(out_f32, ref, atol=2e-3, rtol=2e-3)
    assert jnp.allclose(out_bf16, ref, atol=5e-2, rtol=5e-2)

    print("KERNEL_OK")
</pallas_src>

<mosaic_0001>
module attributes {stable_mosaic.version = 11 : i64} {
  func.func @_upsample_fused_kernel(%arg0: i32, %arg1: memref<32x32xf32, #tpu.memory_space<vmem>>, %arg2: memref<4x32x32xf32, #tpu.memory_space<vmem>>, %arg3: memref<32x32xf32, #tpu.memory_space<vmem>>, %arg4: memref<1x32xf32, #tpu.memory_space<vmem>>, %arg5: memref<4x32x32xf32, #tpu.memory_space<vmem>>) attributes {dimension_semantics = [#tpu.dimension_semantics<parallel>], iteration_bounds = array<i64: 2>, scalar_prefetch = 0 : i64, scratch_operands = 0 : i64, tpu.core_type = #tpu.core_type<tc>, window_params = [{transform_indices = @transform_0, window_bounds = array<i64: 32, 32>}, {pipeline_mode = #tpu.pipeline_mode<synchronous>, transform_indices = @transform_1, window_bounds = array<i64: 4, 32, 32>}, {pipeline_mode = #tpu.pipeline_mode<synchronous>, transform_indices = @transform_2, window_bounds = array<i64: 32, 32>}, {pipeline_mode = #tpu.pipeline_mode<synchronous>, transform_indices = @transform_3, window_bounds = array<i64: 1, 32>}, {transform_indices = @transform_4, window_bounds = array<i64: 4, 32, 32>}]} {
    %c0 = arith.constant 0 : index
    %c0_0 = arith.constant 0 : index
    %0 = vector.load %arg1[%c0, %c0_0] : memref<32x32xf32, #tpu.memory_space<vmem>>, vector<32x32xf32>
    %c0_1 = arith.constant 0 : index
    %c0_2 = arith.constant 0 : index
    %1 = vector.load %arg3[%c0_1, %c0_2] : memref<32x32xf32, #tpu.memory_space<vmem>>, vector<32x32xf32>
    %c0_3 = arith.constant 0 : index
    %c0_4 = arith.constant 0 : index
    %2 = vector.load %arg4[%c0_3, %c0_4] : memref<1x32xf32, #tpu.memory_space<vmem>>, vector<1x32xf32>
    %c0_5 = arith.constant 0 : index
    %c0_6 = arith.constant 0 : index
    %c0_7 = arith.constant 0 : index
    %3 = vector.load %arg2[%c0_5, %c0_6, %c0_7] : memref<4x32x32xf32, #tpu.memory_space<vmem>>, vector<1x32x32xf32>
    %4 = vector.shape_cast %3 : vector<1x32x32xf32> to vector<32x32xf32>
    %cst = arith.constant dense<0.000000e+00> : vector<32x32xf32>
    %5 = tpu.matmul %0, %4, %cst {dimension_numbers = #tpu.dot_dimension_numbers<[1], [0], [0], [1], [0, 0, 1, 1], [], []>} : vector<32x32xf32>, vector<32x32xf32>, vector<32x32xf32> -> vector<32x32xf32>
    %cst_8 = arith.constant dense<0.000000e+00> : vector<32xf32>
    %6 = vector.multi_reduction <add>, %5, %cst_8 [1] : vector<32x32xf32> to vector<32xf32>
    %7 = vector.shape_cast %6 : vector<32xf32> to vector<32x1xf32>
    %cst_9 = arith.constant 3.200000e+01 : f32
    %8 = vector.broadcast %cst_9 : f32 to vector<32x1xf32>
    %9 = arith.divf %7, %8 : vector<32x1xf32>
    %10 = arith.mulf %5, %5 : vector<32x32xf32>
    %cst_10 = arith.constant dense<0.000000e+00> : vector<32xf32>
    %11 = vector.multi_reduction <add>, %10, %cst_10 [1] : vector<32x32xf32> to vector<32xf32>
    %12 = vector.shape_cast %11 : vector<32xf32> to vector<32x1xf32>
    %cst_11 = arith.constant 3.200000e+01 : f32
    %13 = vector.broadcast %cst_11 : f32 to vector<32x1xf32>
    %14 = arith.divf %12, %13 : vector<32x1xf32>
    %15 = arith.mulf %9, %9 : vector<32x1xf32>
    %16 = arith.subf %14, %15 : vector<32x1xf32>
    %cst_12 = arith.constant 9.99999974E-6 : f32
    %17 = vector.broadcast %cst_12 : f32 to vector<32x1xf32>
    %18 = arith.addf %16, %17 : vector<32x1xf32>
    %19 = math.rsqrt %18 : vector<32x1xf32>
    %20 = vector.broadcast %9 : vector<32x1xf32> to vector<32x32xf32>
    %21 = arith.subf %5, %20 : vector<32x32xf32>
    %22 = vector.broadcast %19 : vector<32x1xf32> to vector<32x32xf32>
    %23 = arith.mulf %21, %22 : vector<32x32xf32>
    %cst_13 = arith.constant dense<0.000000e+00> : vector<32x32xf32>
    %24 = tpu.matmul %23, %1, %cst_13 {dimension_numbers = #tpu.dot_dimension_numbers<[1], [0], [0], [1], [0, 0, 1, 1], [], []>} : vector<32x32xf32>, vector<32x32xf32>, vector<32x32xf32> -> vector<32x32xf32>
    %25 = vector.broadcast %2 : vector<1x32xf32> to vector<32x32xf32>
    %26 = arith.addf %24, %25 : vector<32x32xf32>
    %c0_14 = arith.constant 0 : index
    %c0_15 = arith.constant 0 : index
    %c0_16 = arith.constant 0 : index
    %27 = vector.load %arg5[%c0_14, %c0_15, %c0_16] : memref<4x32x32xf32, #tpu.memory_space<vmem>>, vector<1x32x32xf32>
    %28 = vector.shape_cast %27 : vector<1x32x32xf32> to vector<32x32xf32>
    %29 = vector.shape_cast %26 : vector<32x32xf32> to vector<1x32x32xf32>
    tpu.vector_store %arg5[%c0_14, %c0_15, %c0_16], %29 {strides = array<i32>} : memref<4x32x32xf32, #tpu.memory_space<vmem>>, vector<1x32x32xf32>,
    %c1 = arith.constant 1 : index
    %c0_17 = arith.constant 0 : index
    %c0_18 = arith.constant 0 : index
    %30 = vector.load %arg2[%c1, %c0_17, %c0_18] : memref<4x32x32xf32, #tpu.memory_space<vmem>>, vector<1x32x32xf32>
    %31 = vector.shape_cast %30 : vector<1x32x32xf32> to vector<32x32xf32>
    %cst_19 = arith.constant dense<0.000000e+00> : vector<32x32xf32>
    %32 = tpu.matmul %0, %31, %cst_19 {dimension_numbers = #tpu.dot_dimension_numbers<[1], [0], [0], [1], [0, 0, 1, 1], [], []>} : vector<32x32xf32>, vector<32x32xf32>, vector<32x32xf32> -> vector<32x32xf32>
    %cst_20 = arith.constant dense<0.000000e+00> : vector<32xf32>
    %33 = vector.multi_reduction <add>, %32, %cst_20 [1] : vector<32x32xf32> to vector<32xf32>
    %34 = vector.shape_cast %33 : vector<32xf32> to vector<32x1xf32>
    %cst_21 = arith.constant 3.200000e+01 : f32
    %35 = vector.broadcast %cst_21 : f32 to vector<32x1xf32>
    %36 = arith.divf %34, %35 : vector<32x1xf32>
    %37 = arith.mulf %32, %32 : vector<32x32xf32>
    %cst_22 = arith.constant dense<0.000000e+00> : vector<32xf32>
    %38 = vector.multi_reduction <add>, %37, %cst_22 [1] : vector<32x32xf32> to vector<32xf32>
    %39 = vector.shape_cast %38 : vector<32xf32> to vector<32x1xf32>
    %cst_23 = arith.constant 3.200000e+01 : f32
    %40 = vector.broadcast %cst_23 : f32 to vector<32x1xf32>
    %41 = arith.divf %39, %40 : vector<32x1xf32>
    %42 = arith.mulf %36, %36 : vector<32x1xf32>
    %43 = arith.subf %41, %42 : vector<32x1xf32>
    %cst_24 = arith.constant 9.99999974E-6 : f32
    %44 = vector.broadcast %cst_24 : f32 to vector<32x1xf32>
    %45 = arith.addf %43, %44 : vector<32x1xf32>
    %46 = math.rsqrt %45 : vector<32x1xf32>
    %47 = vector.broadcast %36 : vector<32x1xf32> to vector<32x32xf32>
    %48 = arith.subf %32, %47 : vector<32x32xf32>
    %49 = vector.broadcast %46 : vector<32x1xf32> to vector<32x32xf32>
    %50 = arith.mulf %48, %49 : vector<32x32xf32>
    %cst_25 = arith.constant dense<0.000000e+00> : vector<32x32xf32>
    %51 = tpu.matmul %50, %1, %cst_25 {dimension_numbers = #tpu.dot_dimension_numbers<[1], [0], [0], [1], [0, 0, 1, 1], [], []>} : vector<32x32xf32>, vector<32x32xf32>, vector<32x32xf32> -> vector<32x32xf32>
    %52 = vector.broadcast %2 : vector<1x32xf32> to vector<32x32xf32>
    %53 = arith.addf %51, %52 : vector<32x32xf32>
    %c1_26 = arith.constant 1 : index
    %c0_27 = arith.constant 0 : index
    %c0_28 = arith.constant 0 : index
    %54 = vector.load %arg5[%c1_26, %c0_27, %c0_28] : memref<4x32x32xf32, #tpu.memory_space<vmem>>, vector<1x32x32xf32>
    %55 = vector.shape_cast %54 : vector<1x32x32xf32> to vector<32x32xf32>
    %56 = vector.shape_cast %53 : vector<32x32xf32> to vector<1x32x32xf32>
    tpu.vector_store %arg5[%c1_26, %c0_27, %c0_28], %56 {strides = array<i32>} : memref<4x32x32xf32, #tpu.memory_space<vmem>>, vector<1x32x32xf32>,
    %c2 = arith.constant 2 : index
    %c0_29 = arith.constant 0 : index
    %c0_30 = arith.constant 0 : index
    %57 = vector.load %arg2[%c2, %c0_29, %c0_30] : memref<4x32x32xf32, #tpu.memory_space<vmem>>, vector<1x32x32xf32>
    %58 = vector.shape_cast %57 : vector<1x32x32xf32> to vector<32x32xf32>
    %cst_31 = arith.constant dense<0.000000e+00> : vector<32x32xf32>
    %59 = tpu.matmul %0, %58, %cst_31 {dimension_numbers = #tpu.dot_dimension_numbers<[1], [0], [0], [1], [0, 0, 1, 1], [], []>} : vector<32x32xf32>, vector<32x32xf32>, vector<32x32xf32> -> vector<32x32xf32>
    %cst_32 = arith.constant dense<0.000000e+00> : vector<32xf32>
    %60 = vector.multi_reduction <add>, %59, %cst_32 [1] : vector<32x32xf32> to vector<32xf32>
    %61 = vector.shape_cast %60 : vector<32xf32> to vector<32x1xf32>
    %cst_33 = arith.constant 3.200000e+01 : f32
    %62 = vector.broadcast %cst_33 : f32 to vector<32x1xf32>
    %63 = arith.divf %61, %62 : vector<32x1xf32>
    %64 = arith.mulf %59, %59 : vector<32x32xf32>
    %cst_34 = arith.constant dense<0.000000e+00> : vector<32xf32>
    %65 = vector.multi_reduction <add>, %64, %cst_34 [1] : vector<32x32xf32> to vector<32xf32>
    %66 = vector.shape_cast %65 : vector<32xf32> to vector<32x1xf32>
    %cst_35 = arith.constant 3.200000e+01 : f32
    %67 = vector.broadcast %cst_35 : f32 to vector<32x1xf32>
    %68 = arith.divf %66, %67 : vector<32x1xf32>
    %69 = arith.mulf %63, %63 : vector<32x1xf32>
    %70 = arith.subf %68, %69 : vector<32x1xf32>
    %cst_36 = arith.constant 9.99999974E-6 : f32
    %71 = vector.broadcast %cst_36 : f32 to vector<32x1xf32>
    %72 = arith.addf %70, %71 : vector<32x1xf32>
    %73 = math.rsqrt %72 : vector<32x1xf32>
    %74 = vector.broadcast %63 : vector<32x1xf32> to vector<32x32xf32>
    %75 = arith.subf %59, %74 : vector<32x32xf32>
    %76 = vector.broadcast %73 : vector<32x1xf32> to vector<32x32xf32>
    %77 = arith.mulf %75, %76 : vector<32x32xf32>
    %cst_37 = arith.constant dense<0.000000e+00> : vector<32x32xf32>
    %78 = tpu.matmul %77, %1, %cst_37 {dimension_numbers = #tpu.dot_dimension_numbers<[1], [0], [0], [1], [0, 0, 1, 1], [], []>} : vector<32x32xf32>, vector<32x32xf32>, vector<32x32xf32> -> vector<32x32xf32>
    %79 = vector.broadcast %2 : vector<1x32xf32> to vector<32x32xf32>
    %80 = arith.addf %78, %79 : vector<32x32xf32>
    %c2_38 = arith.constant 2 : index
    %c0_39 = arith.constant 0 : index
    %c0_40 = arith.constant 0 : index
    %81 = vector.load %arg5[%c2_38, %c0_39, %c0_40] : memref<4x32x32xf32, #tpu.memory_space<vmem>>, vector<1x32x32xf32>
    %82 = vector.shape_cast %81 : vector<1x32x32xf32> to vector<32x32xf32>
    %83 = vector.shape_cast %80 : vector<32x32xf32> to vector<1x32x32xf32>
    tpu.vector_store %arg5[%c2_38, %c0_39, %c0_40], %83 {strides = array<i32>} : memref<4x32x32xf32, #tpu.memory_space<vmem>>, vector<1x32x32xf32>,
    %c3 = arith.constant 3 : index
    %c0_41 = arith.constant 0 : index
    %c0_42 = arith.constant 0 : index
    %84 = vector.load %arg2[%c3, %c0_41, %c0_42] : memref<4x32x32xf32, #tpu.memory_space<vmem>>, vector<1x32x32xf32>
    %85 = vector.shape_cast %84 : vector<1x32x32xf32> to vector<32x32xf32>
    %cst_43 = arith.constant dense<0.000000e+00> : vector<32x32xf32>
    %86 = tpu.matmul %0, %85, %cst_43 {dimension_numbers = #tpu.dot_dimension_numbers<[1], [0], [0], [1], [0, 0, 1, 1], [], []>} : vector<32x32xf32>, vector<32x32xf32>, vector<32x32xf32> -> vector<32x32xf32>
    %cst_44 = arith.constant dense<0.000000e+00> : vector<32xf32>
    %87 = vector.multi_reduction <add>, %86, %cst_44 [1] : vector<32x32xf32> to vector<32xf32>
    %88 = vector.shape_cast %87 : vector<32xf32> to vector<32x1xf32>
    %cst_45 = arith.constant 3.200000e+01 : f32
    %89 = vector.broadcast %cst_45 : f32 to vector<32x1xf32>
    %90 = arith.divf %88, %89 : vector<32x1xf32>
    %91 = arith.mulf %86, %86 : vector<32x32xf32>
    %cst_46 = arith.constant dense<0.000000e+00> : vector<32xf32>
    %92 = vector.multi_reduction <add>, %91, %cst_46 [1] : vector<32x32xf32> to vector<32xf32>
    %93 = vector.shape_cast %92 : vector<32xf32> to vector<32x1xf32>
    %cst_47 = arith.constant 3.200000e+01 : f32
    %94 = vector.broadcast %cst_47 : f32 to vector<32x1xf32>
    %95 = arith.divf %93, %94 : vector<32x1xf32>
    %96 = arith.mulf %90, %90 : vector<32x1xf32>
    %97 = arith.subf %95, %96 : vector<32x1xf32>
    %cst_48 = arith.constant 9.99999974E-6 : f32
    %98 = vector.broadcast %cst_48 : f32 to vector<32x1xf32>
    %99 = arith.addf %97, %98 : vector<32x1xf32>
    %100 = math.rsqrt %99 : vector<32x1xf32>
    %101 = vector.broadcast %90 : vector<32x1xf32> to vector<32x32xf32>
    %102 = arith.subf %86, %101 : vector<32x32xf32>
    %103 = vector.broadcast %100 : vector<32x1xf32> to vector<32x32xf32>
    %104 = arith.mulf %102, %103 : vector<32x32xf32>
    %cst_49 = arith.constant dense<0.000000e+00> : vector<32x32xf32>
    %105 = tpu.matmul %104, %1, %cst_49 {dimension_numbers = #tpu.dot_dimension_numbers<[1], [0], [0], [1], [0, 0, 1, 1], [], []>} : vector<32x32xf32>, vector<32x32xf32>, vector<32x32xf32> -> vector<32x32xf32>
    %106 = vector.broadcast %2 : vector<1x32xf32> to vector<32x32xf32>
    %107 = arith.addf %105, %106 : vector<32x32xf32>
    %c3_50 = arith.constant 3 : index
    %c0_51 = arith.constant 0 : index
    %c0_52 = arith.constant 0 : index
    %108 = vector.load %arg5[%c3_50, %c0_51, %c0_52] : memref<4x32x32xf32, #tpu.memory_space<vmem>>, vector<1x32x32xf32>
    %109 = vector.shape_cast %108 : vector<1x32x32xf32> to vector<32x32xf32>
    %110 = vector.shape_cast %107 : vector<32x32xf32> to vector<1x32x32xf32>
    tpu.vector_store %arg5[%c3_50, %c0_51, %c0_52], %110 {strides = array<i32>} : memref<4x32x32xf32, #tpu.memory_space<vmem>>, vector<1x32x32xf32>,
    return
  }
  func.func @transform_0(%arg0: i32) -> (i32, i32) {
    %c0_i32 = arith.constant 0 : i32
    %c0_i32_0 = arith.constant 0 : i32
    return %arg0, %c0_i32 : i32, i32
  }
  func.func @transform_1(%arg0: i32) -> (i32, i32, i32) {
    %c0_i32 = arith.constant 0 : i32
    %c0_i32_0 = arith.constant 0 : i32
    %c0_i32_1 = arith.constant 0 : i32
    %c0_i32_2 = arith.constant 0 : i32
    return %c0_i32, %c0_i32_0, %c0_i32_1 : i32, i32, i32
  }
  func.func @transform_2(%arg0: i32) -> (i32, i32) {
    %c0_i32 = arith.constant 0 : i32
    %c0_i32_0 = arith.constant 0 : i32
    %c0_i32_1 = arith.constant 0 : i32
    return %c0_i32, %c0_i32_0 : i32, i32
  }
  func.func @transform_3(%arg0: i32) -> (i32, i32) {
    %c0_i32 = arith.constant 0 : i32
    %c0_i32_0 = arith.constant 0 : i32
    %c0_i32_1 = arith.constant 0 : i32
    return %c0_i32, %c0_i32_0 : i32, i32
  }
  func.func @transform_4(%arg0: i32) -> (i32, i32, i32) {
    %c0_i32 = arith.constant 0 : i32
    %c0_i32_0 = arith.constant 0 : i32
    %c0_i32_1 = arith.constant 0 : i32
    return %c0_i32, %arg0, %c0_i32_0 : i32, i32, i32
  }
}

</mosaic_0001>

<llo_original>
// kernel: upsample2d_forward.1
$region0: #{upsample2d_forward.1}
  #allocation0 [shape = 'u32[]', space=smem, size = 0x4, offset = 0x4, fixed_abs, tag = 'smem constant byte address 0x4 - core index']
  #allocation1 [shape = 'u32[144,128]{1,0:T(1,128)}', space=vmem, size = 0x12000, scoped, tag = 'internal scratch']
  %s0 = inlined_call_operand.vmem [shape: f32[64,32], index: 0, kind: input, shape index: {}]
  %s1 = inlined_call_operand.vmem [shape: f32[4,32,32], index: 1, kind: input, shape index: {}]
  %s2 = inlined_call_operand.vmem [shape: f32[32,32], index: 2, kind: input, shape index: {}]
  %s3 = inlined_call_operand.vmem [shape: f32[1,32], index: 3, kind: input, shape index: {}]
  %s4 = inlined_call_operand.vmem [shape: f32[4,64,32], index: 4, kind: output, shape index: {}]
  %s5 = sld [smem:[#allocation0]]
  $region83: #{upsample2d_forward.1} parent=0
    _
  %s7 = ssub.s32 1, %s5
  %s8 = scalar_select 0, %s7, %s5
  $region1: #{upsample2d_forward.1} parent=0
    #allocation2 [shape = 'u8[131072]{0}', space=vmem, size = 0x20000, scoped, tag = 'output window, operand 0']
    loop: start=0, step=1, limit=4
    $region2: #{upsample2d_forward.1} parent=1 // loop_pre_header
      _
    $region3: #{upsample2d_forward.1} parent=1 // loop_header
      %s10 = sphi 0, %s14
      %p11 = scmp.ge.s32.totalorder %s10, 4
      %s20 = sphi 0, %s22
      %s23 = sphi 0, %s20
      %s24 = sphi 0, %s23
      %s40 = sphi 0, %s24
      %s44 = sphi 0, %s44
      %s46 = sphi 0, %s44
      %s47 = sphi 0, %s46
      %s61 = sphi 0, %s47
      %s65 = sphi 0, %s65
      %s67 = sphi 0, %s65
      %s68 = sphi 0, %s67
      %s82 = sphi 0, %s68
      %s86 = sphi 0, %s86
      %s88 = sphi 0, %s86
      %s89 = sphi 0, %s88
      %s103 = sphi 0, %s89
      %s109 = sphi 0, %s111
      %s112 = sphi 0, %s109
      %s113 = sphi 0, %s112
      %s129 = sphi 0, %s113
    $region4: #{upsample2d_forward.1} parent=1 // loop_header_branch
      %13 = sbr.rel (%p11) target = $region8
    $region5: #{upsample2d_forward.1} parent=1 // loop_body
      %s15 = ssub.s32 %s10, 1
      %s16 = ssub.s32 %s10, 2
      %s17 = sadd.s32 %s10, 1
      %s18 = ssub.s32 %s10, %s17
      %p19 = scmp.eq.s32.totalorder %s18, 0
      %s21 = sadd.s32 %s20, 1
      %s22 = scalar_select %p19, %s20, %s21
      %p25 = pneg %p19
      %p26 = scmp.eq.s32.totalorder %s10, 1
      %p27 = por %p25, %p26
      %p28 = scmp.ne.s32.totalorder %s20, %s23
      %p29 = scmp.eq.s32.totalorder %s10, 0
      %p30 = por %p28, %p29
      %p31 = scmp.ne.s32.totalorder %s20, %s23
      %p32 = scmp.eq.s32.totalorder %s15, 1
      %p33 = por %p31, %p32
      %p34 = scmp.ne.s32.totalorder %s23, %s24
      %p35 = scmp.eq.s32.totalorder %s15, 0
      %p36 = por %p34, %p35
      %p37 = scmp.ne.s32.totalorder %s23, %s24
      %p38 = scmp.eq.s32.totalorder %s16, 1
      %p39 = por %p37, %p38
      %p41 = scmp.ne.s32.totalorder %s24, %s40
      %p42 = scmp.eq.s32.totalorder %s16, 0
      %p43 = por %p41, %p42
      %s45 = sadd.s32 %s44, 1
      %p48 = scmp.eq.s32.totalorder %s10, 1
      %p49 = scmp.ne.s32.totalorder %s44, %s46
      %p50 = scmp.eq.s32.totalorder %s10, 0
      %p51 = por %p49, %p50
      %p52 = scmp.ne.s32.totalorder %s44, %s46
      %p53 = scmp.eq.s32.totalorder %s15, 1
      %p54 = por %p52, %p53
      %p55 = scmp.ne.s32.totalorder %s46, %s47
      %p56 = scmp.eq.s32.totalorder %s15, 0
      %p57 = por %p55, %p56
      %p58 = scmp.ne.s32.totalorder %s46, %s47
      %p59 = scmp.eq.s32.totalorder %s16, 1
      %p60 = por %p58, %p59
      %p62 = scmp.ne.s32.totalorder %s47, %s61
      %p63 = scmp.eq.s32.totalorder %s16, 0
      %p64 = por %p62, %p63
      %s66 = sadd.s32 %s65, 1
      %p69 = scmp.eq.s32.totalorder %s10, 1
      %p70 = scmp.ne.s32.totalorder %s65, %s67
      %p71 = scmp.eq.s32.totalorder %s10, 0
      %p72 = por %p70, %p71
      %p73 = scmp.ne.s32.totalorder %s65, %s67
      %p74 = scmp.eq.s32.totalorder %s15, 1
      %p75 = por %p73, %p74
      %p76 = scmp.ne.s32.totalorder %s67, %s68
      %p77 = scmp.eq.s32.totalorder %s15, 0
      %p78 = por %p76, %p77
      %p79 = scmp.ne.s32.totalorder %s67, %s68
      %p80 = scmp.eq.s32.totalorder %s16, 1
      %p81 = por %p79, %p80
      %p83 = scmp.ne.s32.totalorder %s68, %s82
      %p84 = scmp.eq.s32.totalorder %s16, 0
      %p85 = por %p83, %p84
      %s87 = sadd.s32 %s86, 1
      %p90 = scmp.eq.s32.totalorder %s10, 1
      %p91 = scmp.ne.s32.totalorder %s86, %s88
      %p92 = scmp.eq.s32.totalorder %s10, 0
      %p93 = por %p91, %p92
      %p94 = scmp.ne.s32.totalorder %s86, %s88
      %p95 = scmp.eq.s32.totalorder %s15, 1
      %p96 = por %p94, %p95
      %p97 = scmp.ne.s32.totalorder %s88, %s89
      %p98 = scmp.eq.s32.totalorder %s15, 0
      %p99 = por %p97, %p98
      %p100 = scmp.ne.s32.totalorder %s88, %s89
      %p101 = scmp.eq.s32.totalorder %s16, 1
      %p102 = por %p100, %p101
      %p104 = scmp.ne.s32.totalorder %s89, %s103
      %p105 = scmp.eq.s32.totalorder %s16, 0
      %p106 = por %p104, %p105
      %s107 = ssub.s32 %s10, %s17
      %p108 = scmp.eq.s32.totalorder %s107, 0
      %s110 = sadd.s32 %s109, 1
      %s111 = scalar_select %p108, %s109, %s110
      %p114 = pneg %p108
      %p115 = scmp.eq.s32.totalorder %s10, 1
      %p116 = por %p114, %p115
      %p117 = scmp.ne.s32.totalorder %s109, %s112
      %p118 = scmp.eq.s32.totalorder %s10, 0
      %p119 = por %p117, %p118
      %p120 = scmp.ne.s32.totalorder %s109, %s112
      %p121 = scmp.eq.s32.totalorder %s15, 1
      %p122 = por %p120, %p121
      %p123 = scmp.ne.s32.totalorder %s112, %s113
      %p124 = scmp.eq.s32.totalorder %s15, 0
      %p125 = por %p123, %p124
      %p126 = scmp.ne.s32.totalorder %s112, %s113
      %p127 = scmp.eq.s32.totalorder %s16, 1
      %p128 = por %p126, %p127
      %p130 = scmp.ne.s32.totalorder %s113, %s129
      %p131 = scmp.eq.s32.totalorder %s16, 0
      %p132 = por %p130, %p131
      %p133 = scmp.le.s32.totalorder 1, %s10
      %p134 = scmp.lt.s32.totalorder %s10, 3
      %p135 = pnand %p133, %p134
      %p136 = pneg %p135
      // Predicated region
      $region9: #{upsample2d_forward.1} parent=5 // pred_check
        _
      $region10: #{upsample2d_forward.1} parent=5 // pred_check_branch
        %138 = sbr.rel (%p135) target = $region12
      $region11: #{upsample2d_forward.1} parent=5 // pred_region
        %s139 = ssub.s32 %s10, 1
        // Predicated region
        $region13: #{upsample2d_forward.1} parent=11 // pred_check
          %p140 = pneg %p57
        $region14: #{upsample2d_forward.1} parent=11 // pred_check_branch
          %142 = sbr.rel (%p140) target = $region16
        $region15: #{upsample2d_forward.1} parent=11 // pred_region
          _
        $region16: #{upsample2d_forward.1} parent=11 // pred_fallthru
          _
        // Predicated region
        $region17: #{upsample2d_forward.1} parent=11 // pred_check
          %p143 = pneg %p78
        $region18: #{upsample2d_forward.1} parent=11 // pred_check_branch
          %145 = sbr.rel (%p143) target = $region20
        $region19: #{upsample2d_forward.1} parent=11 // pred_region
          _
        $region20: #{upsample2d_forward.1} parent=11 // pred_fallthru
          _
        // Predicated region
        $region21: #{upsample2d_forward.1} parent=11 // pred_check
          %p146 = pneg %p99
        $region22: #{upsample2d_forward.1} parent=11 // pred_check_branch
          %148 = sbr.rel (%p146) target = $region24
        $region23: #{upsample2d_forward.1} parent=11 // pred_region
          _
        $region24: #{upsample2d_forward.1} parent=11 // pred_fallthru
          _
      $region12: #{upsample2d_forward.1} parent=5 // pred_fallthru
        _
      %p149 = scmp.lt.s32.totalorder %s10, 2
      // Predicated region
      $region25: #{upsample2d_forward.1} parent=5 // pred_check
        %p150 = pneg %p149
      $region26: #{upsample2d_forward.1} parent=5 // pred_check_branch
        %152 = sbr.rel (%p150) target = $region28
      $region27: #{upsample2d_forward.1} parent=5 // pred_region
        // Predicated region
        $region29: #{upsample2d_forward.1} parent=27 // pred_check
          %p153 = pneg %p30
        $region30: #{upsample2d_forward.1} parent=27 // pred_check_branch
          %155 = sbr.rel (%p153) target = $region32
        $region31: #{upsample2d_forward.1} parent=27 // pred_region
          %s156 = smul.u32 4, %s10
          %p157 = scmp.lt.s32.totalorder %s156, 7
          %s158 = scalar_select %p157, %s156, 7
          %s159 = smul.addr %s158, 8
          %s160 = scalar_lea.vmem %s0, %s159
          %s161 = smul.u32 4, %s10
        $region32: #{upsample2d_forward.1} parent=27 // pred_fallthru
          _
      $region28: #{upsample2d_forward.1} parent=5 // pred_fallthru
        _
      %p162 = scmp.le.s32.totalorder 1, %s10
      %p163 = scmp.lt.s32.totalorder %s10, 3
      %p164 = pnand %p162, %p163
      %p165 = pneg %p164
      // Predicated region
      $region33: #{upsample2d_forward.1} parent=5 // pred_check
        _
      $region34: #{upsample2d_forward.1} parent=5 // pred_check_branch
        %167 = sbr.rel (%p164) target = $region36
      $region35: #{upsample2d_forward.1} parent=5 // pred_region
        %s168 = ssub.s32 %s10, 1
        %s169 = smul.u32 4, %s15
        %p170 = scmp.lt.s32.totalorder %s169, 7
        %s171 = scalar_select %p170, %s169, 7
        %s172 = smul.addr %s171, 8
        %s173 = scalar_lea.vmem %s0, %s172
        %p174 = pneg %p36
        %p175 = pneg %p33
        %p176 = pneg %p57
        %p177 = pneg %p54
        %p178 = pneg %p78
        %p179 = pneg %p75
        %p180 = pneg %p99
        %p181 = pneg %p96
        %p182 = pneg %p125
        %p183 = pneg %p122
        %s184 = sand.u32 %s112, 1
        %s185 = sand.u32 %s112, 1
        %s186 = smul.addr %s185, 128
        %s187 = scalar_lea.vmem [#allocation2], %s186
        %s188 = smul.u32 4, %s15
        %p189 = scmp.lt.s32.totalorder %s188, 7
        %s190 = scalar_select %p189, %s188, 7
        %s191 = smul.addr %s190, 8
        %s192 = scalar_lea.vmem %s0, %s191
        %s193 = smul.u32 4, %s15
        %s194 = smul.u32 4, %s15
        %v195 = vld [vmem:[%s192] sm:$0xff]
        %v196 = vld [vmem:[%s192 + $0x8] sm:$0xff]
        %v197 = vld [vmem:[%s192 + $0x10] sm:$0xff]
        %v198 = vld [vmem:[%s192 + $0x18] sm:$0xff]
        %v199 = vld [vmem:[%s2] sm:$0xff]
        %v200 = vld [vmem:[%s2 + $0x8] sm:$0xff]
        %v201 = vld [vmem:[%s2 + $0x10] sm:$0xff]
        %v202 = vld [vmem:[%s2 + $0x18] sm:$0xff]
        %v203 = vld [vmem:[%s3] sm:$0x1]
        %v204 = vld [vmem:[%s1] sm:$0xff]
        %v205 = vld [vmem:[%s1 + $0x8] sm:$0xff]
        %v206 = vld [vmem:[%s1 + $0x10] sm:$0xff]
        %v207 = vld [vmem:[%s1 + $0x18] sm:$0xff]
        %vm208 = vcmask 261120
        %v210 = vsel %vm208, %v195, 0
        %v213 = vsel %vm208, %v196, 0
        %v216 = vsel %vm208, %v197, 0
        %v219 = vsel %vm208, %v198, 0
        %221 = vmatprep.subr.mxu0 0.0
        %222 = vmatpush1.msra.mxu0 0.0
        %223 = vmatprep.subr.mxu0 0.0
        %224 = vmatpush1.msra.mxu0 0.0
        %225 = vmatprep.subr.mxu0 0.0
        %226 = vmatpush1.msra.mxu0 0.0
        %227 = vmatprep.subr.mxu0 0.0
        %228 = vmatpush1.msra.mxu0 0.0
        %229 = vmatprep.subr.mxu0 0.0
        %230 = vmatpush1.msra.mxu0 0.0
        %231 = vmatprep.subr.mxu0 0.0
        %232 = vmatpush1.msra.mxu0 0.0
        %233 = vmatprep.subr.mxu0 0.0
        %234 = vmatpush1.msra.mxu0 0.0
        %235 = vmatprep.subr.mxu0 0.0
        %236 = vmatpush1.msra.mxu0 0.0
        %237 = vmatprep.subr.mxu0 0.0
        %238 = vmatpush1.msra.mxu0 0.0
        %239 = vmatprep.subr.mxu0 0.0
        %240 = vmatpush1.msra.mxu0 0.0
        %241 = vmatprep.subr.mxu0 0.0
        %242 = vmatpush1.msra.mxu0 0.0
        %243 = vmatprep.subr.mxu0 0.0
        %244 = vmatpush1.msra.mxu0 0.0
        %245 = vmatprep.subr.mxu0 0.0
        %246 = vmatpush1.msra.mxu0 %v207
        %247 = vmatprep.subr.mxu0 0.0
        %248 = vmatpush1.msra.mxu0 %v206
        %249 = vmatprep.subr.mxu0 0.0
        %250 = vmatpush1.msra.mxu0 %v205
        %251 = vmatprep.subr.mxu0 0.0
        %252 = vmatpush1.msra.mxu0 %v204
        %253 = vmatprep.subr.mxu0 0.0
        %254 = vmatpush2.msra.mxu0 0.0
        %255 = vmatprep.subr.mxu0 0.0
        %256 = vmatpush2.msra.mxu0 0.0
        %257 = vmatprep.subr.mxu0 0.0
        %258 = vmatpush2.msra.mxu0 0.0
        %259 = vmatprep.subr.mxu0 0.0
        %260 = vmatpush2.msra.mxu0 0.0
        %261 = vmatprep.subr.mxu0 0.0
        %262 = vmatpush2.msra.mxu0 0.0
        %263 = vmatprep.subr.mxu0 0.0
        %264 = vmatpush2.msra.mxu0 0.0
        %265 = vmatprep.subr.mxu0 0.0
        %266 = vmatpush2.msra.mxu0 0.0
        %267 = vmatprep.subr.mxu0 0.0
        %268 = vmatpush2.msra.mxu0 0.0
        %269 = vmatprep.subr.mxu0 0.0
        %270 = vmatpush2.msra.mxu0 0.0
        %271 = vmatprep.subr.mxu0 0.0
        %272 = vmatpush2.msra.mxu0 0.0
        %273 = vmatprep.subr.mxu0 0.0
        %274 = vmatpush2.msra.mxu0 0.0
        %275 = vmatprep.subr.mxu0 0.0
        %276 = vmatpush2.msra.mxu0 0.0
        %277 = vmatprep.subr.mxu0 0.0
        %278 = vmatpush2.msra.mxu0 0.0
        %279 = vmatprep.subr.mxu0 0.0
        %280 = vmatpush2.msra.mxu0 0.0
        %281 = vmatprep.subr.mxu0 0.0
        %282 = vmatpush2.msra.mxu0 0.0
        %283 = vmatprep.subr.mxu0 0.0
        %284 = vmatpush2.msra.mxu0 0.0
        %285 = vmatprep.mubr.f32.mxu0 0.0
        %286 = vmatmul.mubr.f32.gmra.mxu0 %v210
        %v287 = vpop.f32.mrf.mxu0
        %v288 = vadd.f32 0.0, %v287
        %v289 = vpop.f32.mrf.mxu0
        %290 = vmatprep.mubr.f32.mxu0 0.0
        %291 = vmatmul.mubr.f32.gmra.mxu0 %v213
        %v292 = vpop.f32.mrf.mxu0
        %v293 = vadd.f32 0.0, %v292
        %v294 = vpop.f32.mrf.mxu0
        %295 = vmatprep.mubr.f32.mxu0 0.0
        %296 = vmatmul.mubr.f32.gmra.mxu0 %v216
        %v297 = vpop.f32.mrf.mxu0
        %v298 = vadd.f32 0.0, %v297
        %v299 = vpop.f32.mrf.mxu0
        %300 = vmatprep.mubr.f32.mxu0 0.0
        %301 = vmatmul.mubr.f32.gmra.mxu0 %v219
        %v302 = vpop.f32.mrf.mxu0
        %v303 = vadd.f32 0.0, %v302
        %v304 = vpop.f32.mrf.mxu0
        %305 = vdwg.mxu0
        %v306 = vsel %vm208, %v288, 0.0
        %307 = vadd.xlane.f32.xlu0 %v306
        %v308 = vpop.xlane.xlu0 %307
        %v309 = vsel %vm208, %v293, 0.0
        %310 = vadd.xlane.f32.xlu0 %v309
        %v311 = vpop.xlane.xlu0 %310
        %v312 = vsel %vm208, %v298, 0.0
        %313 = vadd.xlane.f32.xlu0 %v312
        %v314 = vpop.xlane.xlu0 %313
        %v315 = vsel %vm208, %v303, 0.0
        %316 = vadd.xlane.f32.xlu0 %v315
        %v317 = vpop.xlane.xlu0 %316
        %v318 = vrcp.pop 32.0
        %v319 = vmul.f32 %v308, %v318
        %v320 = vmul.f32 %v311, %v318
        %v321 = vmul.f32 %v314, %v318
        %v322 = vmul.f32 %v317, %v318
        %v323 = vmul.f32 %v288, %v288
        %v324 = vmul.f32 %v293, %v293
        %v325 = vmul.f32 %v298, %v298
        %v326 = vmul.f32 %v303, %v303
        %v327 = vsel %vm208, %v323, 0.0
        %328 = vadd.xlane.f32.xlu0 %v327
        %v329 = vpop.xlane.xlu0 %328
        %v330 = vsel %vm208, %v324, 0.0
        %331 = vadd.xlane.f32.xlu0 %v330
        %v332 = vpop.xlane.xlu0 %331
        %v333 = vsel %vm208, %v325, 0.0
        %334 = vadd.xlane.f32.xlu0 %v333
        %v335 = vpop.xlane.xlu0 %334
        %v336 = vsel %vm208, %v326, 0.0
        %337 = vadd.xlane.f32.xlu0 %v336
        %v338 = vpop.xlane.xlu0 %337
        %v339 = vmul.f32 %v329, %v318
        %v340 = vmul.f32 %v332, %v318
        %v341 = vmul.f32 %v335, %v318
        %v342 = vmul.f32 %v338, %v318
        %v343 = vmul.f32 %v319, %v319
        %v344 = vmul.f32 %v320, %v320
        %v345 = vmul.f32 %v321, %v321
        %v346 = vmul.f32 %v322, %v322
        %v347 = vsub.f32 %v339, %v343
        %v348 = vsub.f32 %v340, %v344
        %v349 = vsub.f32 %v341, %v345
        %v350 = vsub.f32 %v342, %v346
        %v351 = vadd.f32 %v347, 1e-05
        %v352 = vadd.f32 %v348, 1e-05
        %v353 = vadd.f32 %v349, 1e-05
        %v354 = vadd.f32 %v350, 1e-05
        %v355 = vrsqrt.pop %v351
        %v356 = vrsqrt.pop %v352
        %v357 = vrsqrt.pop %v353
        %v358 = vrsqrt.pop %v354
        %v359 = vsub.f32 %v288, %v319
        %v360 = vsub.f32 %v293, %v320
        %v361 = vsub.f32 %v298, %v321
        %v362 = vsub.f32 %v303, %v322
        %v363 = vmul.f32 %v359, %v355
        %v364 = vmul.f32 %v360, %v356
        %v365 = vmul.f32 %v361, %v357
        %v366 = vmul.f32 %v362, %v358
        %v368 = vlaneseq
        %v369 = vshrl.u32 %v368, 7
        %v370 = vsub.s32 0, %v369
        %v371 = vrot.slane %v203, %v370
        %v374 = vsel %vm208, %v363, 0
        %v377 = vsel %vm208, %v364, 0
        %v380 = vsel %vm208, %v365, 0
        %v383 = vsel %vm208, %v366, 0
        %385 = vmatprep.subr.mxu0 0.0
        %386 = vmatpush1.msra.mxu0 0.0
        %387 = vmatprep.subr.mxu0 0.0
        %388 = vmatpush1.msra.mxu0 0.0
        %389 = vmatprep.subr.mxu0 0.0
        %390 = vmatpush1.msra.mxu0 0.0
        %391 = vmatprep.subr.mxu0 0.0
        %392 = vmatpush1.msra.mxu0 0.0
        %393 = vmatprep.subr.mxu0 0.0
        %394 = vmatpush1.msra.mxu0 0.0
        %395 = vmatprep.subr.mxu0 0.0
        %396 = vmatpush1.msra.mxu0 0.0
        %397 = vmatprep.subr.mxu0 0.0
        %398 = vmatpush1.msra.mxu0 0.0
        %399 = vmatprep.subr.mxu0 0.0
        %400 = vmatpush1.msra.mxu0 0.0
        %401 = vmatprep.subr.mxu0 0.0
        %402 = vmatpush1.msra.mxu0 0.0
        %403 = vmatprep.subr.mxu0 0.0
        %404 = vmatpush1.msra.mxu0 0.0
        %405 = vmatprep.subr.mxu0 0.0
        %406 = vmatpush1.msra.mxu0 0.0
        %407 = vmatprep.subr.mxu0 0.0
        %408 = vmatpush1.msra.mxu0 0.0
        %409 = vmatprep.subr.mxu0 0.0
        %410 = vmatpush1.msra.mxu0 %v202
        %411 = vmatprep.subr.mxu0 0.0
        %412 = vmatpush1.msra.mxu0 %v201
        %413 = vmatprep.subr.mxu0 0.0
        %414 = vmatpush1.msra.mxu0 %v200
        %415 = vmatprep.subr.mxu0 0.0
        %416 = vmatpush1.msra.mxu0 %v199
        %417 = vmatprep.subr.mxu0 0.0
        %418 = vmatpush2.msra.mxu0 0.0
        %419 = vmatprep.subr.mxu0 0.0
        %420 = vmatpush2.msra.mxu0 0.0
        %421 = vmatprep.subr.mxu0 0.0
        %422 = vmatpush2.msra.mxu0 0.0
        %423 = vmatprep.subr.mxu0 0.0
        %424 = vmatpush2.msra.mxu0 0.0
        %425 = vmatprep.subr.mxu0 0.0
        %426 = vmatpush2.msra.mxu0 0.0
        %427 = vmatprep.subr.mxu0 0.0
        %428 = vmatpush2.msra.mxu0 0.0
        %429 = vmatprep.subr.mxu0 0.0
        %430 = vmatpush2.msra.mxu0 0.0
        %431 = vmatprep.subr.mxu0 0.0
        %432 = vmatpush2.msra.mxu0 0.0
        %433 = vmatprep.subr.mxu0 0.0
        %434 = vmatpush2.msra.mxu0 0.0
        %435 = vmatprep.subr.mxu0 0.0
        %436 = vmatpush2.msra.mxu0 0.0
        %437 = vmatprep.subr.mxu0 0.0
        %438 = vmatpush2.msra.mxu0 0.0
        %439 = vmatprep.subr.mxu0 0.0
        %440 = vmatpush2.msra.mxu0 0.0
        %441 = vmatprep.subr.mxu0 0.0
        %442 = vmatpush2.msra.mxu0 0.0
        %443 = vmatprep.subr.mxu0 0.0
        %444 = vmatpush2.msra.mxu0 0.0
        %445 = vmatprep.subr.mxu0 0.0
        %446 = vmatpush2.msra.mxu0 0.0
        %447 = vmatprep.subr.mxu0 0.0
        %448 = vmatpush2.msra.mxu0 0.0
        %449 = vmatprep.mubr.f32.mxu0 0.0
        %450 = vmatmul.mubr.f32.gmra.mxu0 %v374
        %v451 = vpop.f32.mrf.mxu0
        %v452 = vadd.f32 %v371, %v451
        %v453 = vpop.f32.mrf.mxu0
        %454 = vmatprep.mubr.f32.mxu0 0.0
        %455 = vmatmul.mubr.f32.gmra.mxu0 %v377
        %v456 = vpop.f32.mrf.mxu0
        %v457 = vadd.f32 %v371, %v456
        %v458 = vpop.f32.mrf.mxu0
        %459 = vmatprep.mubr.f32.mxu0 0.0
        %460 = vmatmul.mubr.f32.gmra.mxu0 %v380
        %v461 = vpop.f32.mrf.mxu0
        %v462 = vadd.f32 %v371, %v461
        %v463 = vpop.f32.mrf.mxu0
        %464 = vmatprep.mubr.f32.mxu0 0.0
        %465 = vmatmul.mubr.f32.gmra.mxu0 %v383
        %v466 = vpop.f32.mrf.mxu0
        %v467 = vadd.f32 %v371, %v466
        %v468 = vpop.f32.mrf.mxu0
        %469 = vdwg.mxu0
        %470 = vst.msk [vmem:[%s187] sm:$0xff] %vm208, %v452
        %471 = vst.msk [vmem:[%s187 + $0x8] sm:$0xff] %vm208, %v457
        %472 = vst.msk [vmem:[%s187 + $0x10] sm:$0xff] %vm208, %v462
        %473 = vst.msk [vmem:[%s187 + $0x18] sm:$0xff] %vm208, %v467
        %s474 = scalar_lea.vmem %s1, 32
        %v475 = vld [vmem:[%s474] sm:$0xff]
        %v476 = vld [vmem:[%s474 + $0x8] sm:$0xff]
        %v477 = vld [vmem:[%s474 + $0x10] sm:$0xff]
        %v478 = vld [vmem:[%s474 + $0x18] sm:$0xff]
        %479 = vmatprep.subr.mxu0 0.0
        %480 = vmatpush1.msra.mxu0 0.0
        %481 = vmatprep.subr.mxu0 0.0
        %482 = vmatpush1.msra.mxu0 0.0
        %483 = vmatprep.subr.mxu0 0.0
        %484 = vmatpush1.msra.mxu0 0.0
        %485 = vmatprep.subr.mxu0 0.0
        %486 = vmatpush1.msra.mxu0 0.0
        %487 = vmatprep.subr.mxu0 0.0
        %488 = vmatpush1.msra.mxu0 0.0
        %489 = vmatprep.subr.mxu0 0.0
        %490 = vmatpush1.msra.mxu0 0.0
        %491 = vmatprep.subr.mxu0 0.0
        %492 = vmatpush1.msra.mxu0 0.0
        %493 = vmatprep.subr.mxu0 0.0
        %494 = vmatpush1.msra.mxu0 0.0
        %495 = vmatprep.subr.mxu0 0.0
        %496 = vmatpush1.msra.mxu0 0.0
        %497 = vmatprep.subr.mxu0 0.0
        %498 = vmatpush1.msra.mxu0 0.0
        %499 = vmatprep.subr.mxu0 0.0
        %500 = vmatpush1.msra.mxu0 0.0
        %501 = vmatprep.subr.mxu0 0.0
        %502 = vmatpush1.msra.mxu0 0.0
        %503 = vmatprep.subr.mxu0 0.0
        %504 = vmatpush1.msra.mxu0 %v478
        %505 = vmatprep.subr.mxu0 0.0
        %506 = vmatpush1.msra.mxu0 %v477
        %507 = vmatprep.subr.mxu0 0.0
        %508 = vmatpush1.msra.mxu0 %v476
        %509 = vmatprep.subr.mxu0 0.0
        %510 = vmatpush1.msra.mxu0 %v475
        %511 = vmatprep.subr.mxu0 0.0
        %512 = vmatpush2.msra.mxu0 0.0
        %513 = vmatprep.subr.mxu0 0.0
        %514 = vmatpush2.msra.mxu0 0.0
        %515 = vmatprep.subr.mxu0 0.0
        %516 = vmatpush2.msra.mxu0 0.0
        %517 = vmatprep.subr.mxu0 0.0
        %518 = vmatpush2.msra.mxu0 0.0
        %519 = vmatprep.subr.mxu0 0.0
        %520 = vmatpush2.msra.mxu0 0.0
        %521 = vmatprep.subr.mxu0 0.0
        %522 = vmatpush2.msra.mxu0 0.0
        %523 = vmatprep.subr.mxu0 0.0
        %524 = vmatpush2.msra.mxu0 0.0
        %525 = vmatprep.subr.mxu0 0.0
        %526 = vmatpush2.msra.mxu0 0.0
        %527 = vmatprep.subr.mxu0 0.0
        %528 = vmatpush2.msra.mxu0 0.0
        %529 = vmatprep.subr.mxu0 0.0
        %530 = vmatpush2.msra.mxu0 0.0
        %531 = vmatprep.subr.mxu0 0.0
        %532 = vmatpush2.msra.mxu0 0.0
        %533 = vmatprep.subr.mxu0 0.0
        %534 = vmatpush2.msra.mxu0 0.0
        %535 = vmatprep.subr.mxu0 0.0
        %536 = vmatpush2.msra.mxu0 0.0
        %537 = vmatprep.subr.mxu0 0.0
        %538 = vmatpush2.msra.mxu0 0.0
        %539 = vmatprep.subr.mxu0 0.0
        %540 = vmatpush2.msra.mxu0 0.0
        %541 = vmatprep.subr.mxu0 0.0
        %542 = vmatpush2.msra.mxu0 0.0
        %543 = vmatprep.mubr.f32.mxu0 0.0
        %544 = vmatmul.mubr.f32.gmra.mxu0 %v210
        %v545 = vpop.f32.mrf.mxu0
        %v546 = vadd.f32 0.0, %v545
        %v547 = vpop.f32.mrf.mxu0
        %548 = vmatprep.mubr.f32.mxu0 0.0
        %549 = vmatmul.mubr.f32.gmra.mxu0 %v213
        %v550 = vpop.f32.mrf.mxu0
        %v551 = vadd.f32 0.0, %v550
        %v552 = vpop.f32.mrf.mxu0
        %553 = vmatprep.mubr.f32.mxu0 0.0
        %554 = vmatmul.mubr.f32.gmra.mxu0 %v216
        %v555 = vpop.f32.mrf.mxu0
        %v556 = vadd.f32 0.0, %v555
        %v557 = vpop.f32.mrf.mxu0
        %558 = vmatprep.mubr.f32.mxu0 0.0
        %559 = vmatmul.mubr.f32.gmra.mxu0 %v219
        %v560 = vpop.f32.mrf.mxu0
        %v561 = vadd.f32 0.0, %v560
        %v562 = vpop.f32.mrf.mxu0
        %563 = vdwg.mxu0
        %v564 = vsel %vm208, %v546, 0.0
        %565 = vadd.xlane.f32.xlu0 %v564
        %v566 = vpop.xlane.xlu0 %565
        %v567 = vsel %vm208, %v551, 0.0
        %568 = vadd.xlane.f32.xlu0 %v567
        %v569 = vpop.xlane.xlu0 %568
        %v570 = vsel %vm208, %v556, 0.0
        %571 = vadd.xlane.f32.xlu0 %v570
        %v572 = vpop.xlane.xlu0 %571
        %v573 = vsel %vm208, %v561, 0.0
        %574 = vadd.xlane.f32.xlu0 %v573
        %v575 = vpop.xlane.xlu0 %574
        %v576 = vmul.f32 %v566, %v318
        %v577 = vmul.f32 %v569, %v318
        %v578 = vmul.f32 %v572, %v318
        %v579 = vmul.f32 %v575, %v318
        %v580 = vmul.f32 %v546, %v546
        %v581 = vmul.f32 %v551, %v551
        %v582 = vmul.f32 %v556, %v556
        %v583 = vmul.f32 %v561, %v561
        %v584 = vsel %vm208, %v580, 0.0
        %585 = vadd.xlane.f32.xlu0 %v584
        %v586 = vpop.xlane.xlu0 %585
        %v587 = vsel %vm208, %v581, 0.0
        %588 = vadd.xlane.f32.xlu0 %v587
        %v589 = vpop.xlane.xlu0 %588
        %v590 = vsel %vm208, %v582, 0.0
        %591 = vadd.xlane.f32.xlu0 %v590
        %v592 = vpop.xlane.xlu0 %591
        %v593 = vsel %vm208, %v583, 0.0
        %594 = vadd.xlane.f32.xlu0 %v593
        %v595 = vpop.xlane.xlu0 %594
        %v596 = vmul.f32 %v586, %v318
        %v597 = vmul.f32 %v589, %v318
        %v598 = vmul.f32 %v592, %v318
        %v599 = vmul.f32 %v595, %v318
        %v600 = vmul.f32 %v576, %v576
        %v601 = vmul.f32 %v577, %v577
        %v602 = vmul.f32 %v578, %v578
        %v603 = vmul.f32 %v579, %v579
        %v604 = vsub.f32 %v596, %v600
        %v605 = vsub.f32 %v597, %v601
        %v606 = vsub.f32 %v598, %v602
        %v607 = vsub.f32 %v599, %v603
        %v608 = vadd.f32 %v604, 1e-05
        %v609 = vadd.f32 %v605, 1e-05
        %v610 = vadd.f32 %v606, 1e-05
        %v611 = vadd.f32 %v607, 1e-05
        %v612 = vrsqrt.pop %v608
        %v613 = vrsqrt.pop %v609
        %v614 = vrsqrt.pop %v610
        %v615 = vrsqrt.pop %v611
        %v616 = vsub.f32 %v546, %v576
        %v617 = vsub.f32 %v551, %v577
        %v618 = vsub.f32 %v556, %v578
        %v619 = vsub.f32 %v561, %v579
        %v620 = vmul.f32 %v616, %v612
        %v621 = vmul.f32 %v617, %v613
        %v622 = vmul.f32 %v618, %v614
        %v623 = vmul.f32 %v619, %v615
        %v625 = vsel %vm208, %v620, 0
        %v628 = vsel %vm208, %v621, 0
        %v631 = vsel %vm208, %v622, 0
        %v634 = vsel %vm208, %v623, 0
        %636 = vmatprep.subr.mxu0 0.0
        %637 = vmatpush1.msra.mxu0 0.0
        %638 = vmatprep.subr.mxu0 0.0
        %639 = vmatpush1.msra.mxu0 0.0
        %640 = vmatprep.subr.mxu0 0.0
        %641 = vmatpush1.msra.mxu0 0.0
        %642 = vmatprep.subr.mxu0 0.0
        %643 = vmatpush1.msra.mxu0 0.0
        %644 = vmatprep.subr.mxu0 0.0
        %645 = vmatpush1.msra.mxu0 0.0
        %646 = vmatprep.subr.mxu0 0.0
        %647 = vmatpush1.msra.mxu0 0.0
        %648 = vmatprep.subr.mxu0 0.0
        %649 = vmatpush1.msra.mxu0 0.0
        %650 = vmatprep.subr.mxu0 0.0
        %651 = vmatpush1.msra.mxu0 0.0
        %652 = vmatprep.subr.mxu0 0.0
        %653 = vmatpush1.msra.mxu0 0.0
        %654 = vmatprep.subr.mxu0 0.0
        %655 = vmatpush1.msra.mxu0 0.0
        %656 = vmatprep.subr.mxu0 0.0
        %657 = vmatpush1.msra.mxu0 0.0
        %658 = vmatprep.subr.mxu0 0.0
        %659 = vmatpush1.msra.mxu0 0.0
        %660 = vmatprep.subr.mxu0 0.0
        %661 = vmatpush1.msra.mxu0 %v202
        %662 = vmatprep.subr.mxu0 0.0
        %663 = vmatpush1.msra.mxu0 %v201
        %664 = vmatprep.subr.mxu0 0.0
        %665 = vmatpush1.msra.mxu0 %v200
        %666 = vmatprep.subr.mxu0 0.0
        %667 = vmatpush1.msra.mxu0 %v199
        %668 = vmatprep.subr.mxu0 0.0
        %669 = vmatpush2.msra.mxu0 0.0
        %670 = vmatprep.subr.mxu0 0.0
        %671 = vmatpush2.msra.mxu0 0.0
        %672 = vmatprep.subr.mxu0 0.0
        %673 = vmatpush2.msra.mxu0 0.0
        %674 = vmatprep.subr.mxu0 0.0
        %675 = vmatpush2.msra.mxu0 0.0
        %676 = vmatprep.subr.mxu0 0.0
        %677 = vmatpush2.msra.mxu0 0.0
        %678 = vmatprep.subr.mxu0 0.0
        %679 = vmatpush2.msra.mxu0 0.0
        %680 = vmatprep.subr.mxu0 0.0
        %681 = vmatpush2.msra.mxu0 0.0
        %682 = vmatprep.subr.mxu0 0.0
        %683 = vmatpush2.msra.mxu0 0.0
        %684 = vmatprep.subr.mxu0 0.0
        %685 = vmatpush2.msra.mxu0 0.0
        %686 = vmatprep.subr.mxu0 0.0
        %687 = vmatpush2.msra.mxu0 0.0
        %688 = vmatprep.subr.mxu0 0.0
        %689 = vmatpush2.msra.mxu0 0.0
        %690 = vmatprep.subr.mxu0 0.0
        %691 = vmatpush2.msra.mxu0 0.0
        %692 = vmatprep.subr.mxu0 0.0
        %693 = vmatpush2.msra.mxu0 0.0
        %694 = vmatprep.subr.mxu0 0.0
        %695 = vmatpush2.msra.mxu0 0.0
        %696 = vmatprep.subr.mxu0 0.0
        %697 = vmatpush2.msra.mxu0 0.0
        %698 = vmatprep.subr.mxu0 0.0
        %699 = vmatpush2.msra.mxu0 0.0
        %700 = vmatprep.mubr.f32.mxu0 0.0
        %701 = vmatmul.mubr.f32.gmra.mxu0 %v625
        %v702 = vpop.f32.mrf.mxu0
        %v703 = vadd.f32 %v371, %v702
        %v704 = vpop.f32.mrf.mxu0
        %705 = vmatprep.mubr.f32.mxu0 0.0
        %706 = vmatmul.mubr.f32.gmra.mxu0 %v628
        %v707 = vpop.f32.mrf.mxu0
        %v708 = vadd.f32 %v371, %v707
        %v709 = vpop.f32.mrf.mxu0
        %710 = vmatprep.mubr.f32.mxu0 0.0
        %711 = vmatmul.mubr.f32.gmra.mxu0 %v631
        %v712 = vpop.f32.mrf.mxu0
        %v713 = vadd.f32 %v371, %v712
        %v714 = vpop.f32.mrf.mxu0
        %715 = vmatprep.mubr.f32.mxu0 0.0
        %716 = vmatmul.mubr.f32.gmra.mxu0 %v634
        %v717 = vpop.f32.mrf.mxu0
        %v718 = vadd.f32 %v371, %v717
        %v719 = vpop.f32.mrf.mxu0
        %720 = vdwg.mxu0
        %s721 = scalar_lea.vmem %s187, 32 [#allocation2]
        %722 = vst.msk [vmem:[%s721] sm:$0xff] %vm208, %v703
        %723 = vst.msk [vmem:[%s721 + $0x8] sm:$0xff] %vm208, %v708
        %724 = vst.msk [vmem:[%s721 + $0x10] sm:$0xff] %vm208, %v713
        %725 = vst.msk [vmem:[%s721 + $0x18] sm:$0xff] %vm208, %v718
        %s726 = scalar_lea.vmem %s1, 64
        %v727 = vld [vmem:[%s726] sm:$0xff]
        %v728 = vld [vmem:[%s726 + $0x8] sm:$0xff]
        %v729 = vld [vmem:[%s726 + $0x10] sm:$0xff]
        %v730 = vld [vmem:[%s726 + $0x18] sm:$0xff]
        %731 = vmatprep.subr.mxu0 0.0
        %732 = vmatpush1.msra.mxu0 0.0
        %733 = vmatprep.subr.mxu0 0.0
        %734 = vmatpush1.msra.mxu0 0.0
        %735 = vmatprep.subr.mxu0 0.0
        %736 = vmatpush1.msra.mxu0 0.0
        %737 = vmatprep.subr.mxu0 0.0
        %738 = vmatpush1.msra.mxu0 0.0
        %739 = vmatprep.subr.mxu0 0.0
        %740 = vmatpush1.msra.mxu0 0.0
        %741 = vmatprep.subr.mxu0 0.0
        %742 = vmatpush1.msra.mxu0 0.0
        %743 = vmatprep.subr.mxu0 0.0
        %744 = vmatpush1.msra.mxu0 0.0
        %745 = vmatprep.subr.mxu0 0.0
        %746 = vmatpush1.msra.mxu0 0.0
        %747 = vmatprep.subr.mxu0 0.0
        %748 = vmatpush1.msra.mxu0 0.0
        %749 = vmatprep.subr.mxu0 0.0
        %750 = vmatpush1.msra.mxu0 0.0
        %751 = vmatprep.subr.mxu0 0.0
        %752 = vmatpush1.msra.mxu0 0.0
        %753 = vmatprep.subr.mxu0 0.0
        %754 = vmatpush1.msra.mxu0 0.0
        %755 = vmatprep.subr.mxu0 0.0
        %756 = vmatpush1.msra.mxu0 %v730
        %757 = vmatprep.subr.mxu0 0.0
        %758 = vmatpush1.msra.mxu0 %v729
        %759 = vmatprep.subr.mxu0 0.0
        %760 = vmatpush1.msra.mxu0 %v728
        %761 = vmatprep.subr.mxu0 0.0
        %762 = vmatpush1.msra.mxu0 %v727
        %763 = vmatprep.subr.mxu0 0.0
        %764 = vmatpush2.msra.mxu0 0.0
        %765 = vmatprep.subr.mxu0 0.0
        %766 = vmatpush2.msra.mxu0 0.0
        %767 = vmatprep.subr.mxu0 0.0
        %768 = vmatpush2.msra.mxu0 0.0
        %769 = vmatprep.subr.mxu0 0.0
        %770 = vmatpush2.msra.mxu0 0.0
        %771 = vmatprep.subr.mxu0 0.0
        %772 = vmatpush2.msra.mxu0 0.0
        %773 = vmatprep.subr.mxu0 0.0
        %774 = vmatpush2.msra.mxu0 0.0
        %775 = vmatprep.subr.mxu0 0.0
        %776 = vmatpush2.msra.mxu0 0.0
        %777 = vmatprep.subr.mxu0 0.0
        %778 = vmatpush2.msra.mxu0 0.0
        %779 = vmatprep.subr.mxu0 0.0
        %780 = vmatpush2.msra.mxu0 0.0
        %781 = vmatprep.subr.mxu0 0.0
        %782 = vmatpush2.msra.mxu0 0.0
        %783 = vmatprep.subr.mxu0 0.0
        %784 = vmatpush2.msra.mxu0 0.0
        %785 = vmatprep.subr.mxu0 0.0
        %786 = vmatpush2.msra.mxu0 0.0
        %787 = vmatprep.subr.mxu0 0.0
        %788 = vmatpush2.msra.mxu0 0.0
        %789 = vmatprep.subr.mxu0 0.0
        %790 = vmatpush2.msra.mxu0 0.0
        %791 = vmatprep.subr.mxu0 0.0
        %792 = vmatpush2.msra.mxu0 0.0
        %793 = vmatprep.subr.mxu0 0.0
        %794 = vmatpush2.msra.mxu0 0.0
        %795 = vmatprep.mubr.f32.mxu0 0.0
        %796 = vmatmul.mubr.f32.gmra.mxu0 %v210
        %v797 = vpop.f32.mrf.mxu0
        %v798 = vadd.f32 0.0, %v797
        %v799 = vpop.f32.mrf.mxu0
        %800 = vmatprep.mubr.f32.mxu0 0.0
        %801 = vmatmul.mubr.f32.gmra.mxu0 %v213
        %v802 = vpop.f32.mrf.mxu0
        %v803 = vadd.f32 0.0, %v802
        %v804 = vpop.f32.mrf.mxu0
        %805 = vmatprep.mubr.f32.mxu0 0.0
        %806 = vmatmul.mubr.f32.gmra.mxu0 %v216
        %v807 = vpop.f32.mrf.mxu0
        %v808 = vadd.f32 0.0, %v807
        %v809 = vpop.f32.mrf.mxu0
        %810 = vmatprep.mubr.f32.mxu0 0.0
        %811 = vmatmul.mubr.f32.gmra.mxu0 %v219
        %v812 = vpop.f32.mrf.mxu0
        %v813 = vadd.f32 0.0, %v812
        %v814 = vpop.f32.mrf.mxu0
        %815 = vdwg.mxu0
        %v816 = vsel %vm208, %v798, 0.0
        %817 = vadd.xlane.f32.xlu0 %v816
        %v818 = vpop.xlane.xlu0 %817
        %v819 = vsel %vm208, %v803, 0.0
        %820 = vadd.xlane.f32.xlu0 %v819
        %v821 = vpop.xlane.xlu0 %820
        %v822 = vsel %vm208, %v808, 0.0
        %823 = vadd.xlane.f32.xlu0 %v822
        %v824 = vpop.xlane.xlu0 %823
        %v825 = vsel %vm208, %v813, 0.0
        %826 = vadd.xlane.f32.xlu0 %v825
        %v827 = vpop.xlane.xlu0 %826
        %v828 = vmul.f32 %v818, %v318
        %v829 = vmul.f32 %v821, %v318
        %v830 = vmul.f32 %v824, %v318
        %v831 = vmul.f32 %v827, %v318
        %v832 = vmul.f32 %v798, %v798
        %v833 = vmul.f32 %v803, %v803
        %v834 = vmul.f32 %v808, %v808
        %v835 = vmul.f32 %v813, %v813
        %v836 = vsel %vm208, %v832, 0.0
        %837 = vadd.xlane.f32.xlu0 %v836
        %v838 = vpop.xlane.xlu0 %837
        %v839 = vsel %vm208, %v833, 0.0
        %840 = vadd.xlane.f32.xlu0 %v839
        %v841 = vpop.xlane.xlu0 %840
        %v842 = vsel %vm208, %v834, 0.0
        %843 = vadd.xlane.f32.xlu0 %v842
        %v844 = vpop.xlane.xlu0 %843
        %v845 = vsel %vm208, %v835, 0.0
        %846 = vadd.xlane.f32.xlu0 %v845
        %v847 = vpop.xlane.xlu0 %846
        %v848 = vmul.f32 %v838, %v318
        %v849 = vmul.f32 %v841, %v318
        %v850 = vmul.f32 %v844, %v318
        %v851 = vmul.f32 %v847, %v318
        %v852 = vmul.f32 %v828, %v828
        %v853 = vmul.f32 %v829, %v829
        %v854 = vmul.f32 %v830, %v830
        %v855 = vmul.f32 %v831, %v831
        %v856 = vsub.f32 %v848, %v852
        %v857 = vsub.f32 %v849, %v853
        %v858 = vsub.f32 %v850, %v854
        %v859 = vsub.f32 %v851, %v855
        %v860 = vadd.f32 %v856, 1e-05
        %v861 = vadd.f32 %v857, 1e-05
        %v862 = vadd.f32 %v858, 1e-05
        %v863 = vadd.f32 %v859, 1e-05
        %v864 = vrsqrt.pop %v860
        %v865 = vrsqrt.pop %v861
        %v866 = vrsqrt.pop %v862
        %v867 = vrsqrt.pop %v863
        %v868 = vsub.f32 %v798, %v828
        %v869 = vsub.f32 %v803, %v829
        %v870 = vsub.f32 %v808, %v830
        %v871 = vsub.f32 %v813, %v831
        %v872 = vmul.f32 %v868, %v864
        %v873 = vmul.f32 %v869, %v865
        %v874 = vmul.f32 %v870, %v866
        %v875 = vmul.f32 %v871, %v867
        %v877 = vsel %vm208, %v872, 0
        %v880 = vsel %vm208, %v873, 0
        %v883 = vsel %vm208, %v874, 0
        %v886 = vsel %vm208, %v875, 0
        %888 = vmatprep.subr.mxu0 0.0
        %889 = vmatpush1.msra.mxu0 0.0
        %890 = vmatprep.subr.mxu0 0.0
        %891 = vmatpush1.msra.mxu0 0.0
        %892 = vmatprep.subr.mxu0 0.0
        %893 = vmatpush1.msra.mxu0 0.0
        %894 = vmatprep.subr.mxu0 0.0
        %895 = vmatpush1.msra.mxu0 0.0
        %896 = vmatprep.subr.mxu0 0.0
        %897 = vmatpush1.msra.mxu0 0.0
        %898 = vmatprep.subr.mxu0 0.0
        %899 = vmatpush1.msra.mxu0 0.0
        %900 = vmatprep.subr.mxu0 0.0
        %901 = vmatpush1.msra.mxu0 0.0
        %902 = vmatprep.subr.mxu0 0.0
        %903 = vmatpush1.msra.mxu0 0.0
        %904 = vmatprep.subr.mxu0 0.0
        %905 = vmatpush1.msra.mxu0 0.0
        %906 = vmatprep.subr.mxu0 0.0
        %907 = vmatpush1.msra.mxu0 0.0
        %908 = vmatprep.subr.mxu0 0.0
        %909 = vmatpush1.msra.mxu0 0.0
        %910 = vmatprep.subr.mxu0 0.0
        %911 = vmatpush1.msra.mxu0 0.0
        %912 = vmatprep.subr.mxu0 0.0
        %913 = vmatpush1.msra.mxu0 %v202
        %914 = vmatprep.subr.mxu0 0.0
        %915 = vmatpush1.msra.mxu0 %v201
        %916 = vmatprep.subr.mxu0 0.0
        %917 = vmatpush1.msra.mxu0 %v200
        %918 = vmatprep.subr.mxu0 0.0
        %919 = vmatpush1.msra.mxu0 %v199
        %920 = vmatprep.subr.mxu0 0.0
        %921 = vmatpush2.msra.mxu0 0.0
        %922 = vmatprep.subr.mxu0 0.0
        %923 = vmatpush2.msra.mxu0 0.0
        %924 = vmatprep.subr.mxu0 0.0
        %925 = vmatpush2.msra.mxu0 0.0
        %926 = vmatprep.subr.mxu0 0.0
        %927 = vmatpush2.msra.mxu0 0.0
        %928 = vmatprep.subr.mxu0 0.0
        %929 = vmatpush2.msra.mxu0 0.0
        %930 = vmatprep.subr.mxu0 0.0
        %931 = vmatpush2.msra.mxu0 0.0
        %932 = vmatprep.subr.mxu0 0.0
        %933 = vmatpush2.msra.mxu0 0.0
        %934 = vmatprep.subr.mxu0 0.0
        %935 = vmatpush2.msra.mxu0 0.0
        %936 = vmatprep.subr.mxu0 0.0
        %937 = vmatpush2.msra.mxu0 0.0
        %938 = vmatprep.subr.mxu0 0.0
        %939 = vmatpush2.msra.mxu0 0.0
        %940 = vmatprep.subr.mxu0 0.0
        %941 = vmatpush2.msra.mxu0 0.0
        %942 = vmatprep.subr.mxu0 0.0
        %943 = vmatpush2.msra.mxu0 0.0
        %944 = vmatprep.subr.mxu0 0.0
        %945 = vmatpush2.msra.mxu0 0.0
        %946 = vmatprep.subr.mxu0 0.0
        %947 = vmatpush2.msra.mxu0 0.0
        %948 = vmatprep.subr.mxu0 0.0
        %949 = vmatpush2.msra.mxu0 0.0
        %950 = vmatprep.subr.mxu0 0.0
        %951 = vmatpush2.msra.mxu0 0.0
        %952 = vmatprep.mubr.f32.mxu0 0.0
        %953 = vmatmul.mubr.f32.gmra.mxu0 %v877
        %v954 = vpop.f32.mrf.mxu0
        %v955 = vadd.f32 %v371, %v954
        %v956 = vpop.f32.mrf.mxu0
        %957 = vmatprep.mubr.f32.mxu0 0.0
        %958 = vmatmul.mubr.f32.gmra.mxu0 %v880
        %v959 = vpop.f32.mrf.mxu0
        %v960 = vadd.f32 %v371, %v959
        %v961 = vpop.f32.mrf.mxu0
        %962 = vmatprep.mubr.f32.mxu0 0.0
        %963 = vmatmul.mubr.f32.gmra.mxu0 %v883
        %v964 = vpop.f32.mrf.mxu0
        %v965 = vadd.f32 %v371, %v964
        %v966 = vpop.f32.mrf.mxu0
        %967 = vmatprep.mubr.f32.mxu0 0.0
        %968 = vmatmul.mubr.f32.gmra.mxu0 %v886
        %v969 = vpop.f32.mrf.mxu0
        %v970 = vadd.f32 %v371, %v969
        %v971 = vpop.f32.mrf.mxu0
        %972 = vdwg.mxu0
        %s973 = scalar_lea.vmem %s187, 64 [#allocation2]
        %974 = vst.msk [vmem:[%s973] sm:$0xff] %vm208, %v955
        %975 = vst.msk [vmem:[%s973 + $0x8] sm:$0xff] %vm208, %v960
        %976 = vst.msk [vmem:[%s973 + $0x10] sm:$0xff] %vm208, %v965
        %977 = vst.msk [vmem:[%s973 + $0x18] sm:$0xff] %vm208, %v970
        %s978 = scalar_lea.vmem %s1, 96
        %v979 = vld [vmem:[%s978] sm:$0xff]
        %v980 = vld [vmem:[%s978 + $0x8] sm:$0xff]
        %v981 = vld [vmem:[%s978 + $0x10] sm:$0xff]
        %v982 = vld [vmem:[%s978 + $0x18] sm:$0xff]
        %983 = vmatprep.subr.mxu0 0.0
        %984 = vmatpush1.msra.mxu0 0.0
        %985 = vmatprep.subr.mxu0 0.0
        %986 = vmatpush1.msra.mxu0 0.0
        %987 = vmatprep.subr.mxu0 0.0
        %988 = vmatpush1.msra.mxu0 0.0
        %989 = vmatprep.subr.mxu0 0.0
        %990 = vmatpush1.msra.mxu0 0.0
        %991 = vmatprep.subr.mxu0 0.0
        %992 = vmatpush1.msra.mxu0 0.0
        %993 = vmatprep.subr.mxu0 0.0
        %994 = vmatpush1.msra.mxu0 0.0
        %995 = vmatprep.subr.mxu0 0.0
        %996 = vmatpush1.msra.mxu0 0.0
        %997 = vmatprep.subr.mxu0 0.0
        %998 = vmatpush1.msra.mxu0 0.0
        %999 = vmatprep.subr.mxu0 0.0
        %1000 = vmatpush1.msra.mxu0 0.0
        %1001 = vmatprep.subr.mxu0 0.0
        %1002 = vmatpush1.msra.mxu0 0.0
        %1003 = vmatprep.subr.mxu0 0.0
        %1004 = vmatpush1.msra.mxu0 0.0
        %1005 = vmatprep.subr.mxu0 0.0
        %1006 = vmatpush1.msra.mxu0 0.0
        %1007 = vmatprep.subr.mxu0 0.0
        %1008 = vmatpush1.msra.mxu0 %v982
        %1009 = vmatprep.subr.mxu0 0.0
        %1010 = vmatpush1.msra.mxu0 %v981
        %1011 = vmatprep.subr.mxu0 0.0
        %1012 = vmatpush1.msra.mxu0 %v980
        %1013 = vmatprep.subr.mxu0 0.0
        %1014 = vmatpush1.msra.mxu0 %v979
        %1015 = vmatprep.subr.mxu0 0.0
        %1016 = vmatpush2.msra.mxu0 0.0
        %1017 = vmatprep.subr.mxu0 0.0
        %1018 = vmatpush2.msra.mxu0 0.0
        %1019 = vmatprep.subr.mxu0 0.0
        %1020 = vmatpush2.msra.mxu0 0.0
        %1021 = vmatprep.subr.mxu0 0.0
        %1022 = vmatpush2.msra.mxu0 0.0
        %1023 = vmatprep.subr.mxu0 0.0
        %1024 = vmatpush2.msra.mxu0 0.0
        %1025 = vmatprep.subr.mxu0 0.0
        %1026 = vmatpush2.msra.mxu0 0.0
        %1027 = vmatprep.subr.mxu0 0.0
        %1028 = vmatpush2.msra.mxu0 0.0
        %1029 = vmatprep.subr.mxu0 0.0
        %1030 = vmatpush2.msra.mxu0 0.0
        %1031 = vmatprep.subr.mxu0 0.0
        %1032 = vmatpush2.msra.mxu0 0.0
        %1033 = vmatprep.subr.mxu0 0.0
        %1034 = vmatpush2.msra.mxu0 0.0
        %1035 = vmatprep.subr.mxu0 0.0
        %1036 = vmatpush2.msra.mxu0 0.0
        %1037 = vmatprep.subr.mxu0 0.0
        %1038 = vmatpush2.msra.mxu0 0.0
        %1039 = vmatprep.subr.mxu0 0.0
        %1040 = vmatpush2.msra.mxu0 0.0
        %1041 = vmatprep.subr.mxu0 0.0
        %1042 = vmatpush2.msra.mxu0 0.0
        %1043 = vmatprep.subr.mxu0 0.0
        %1044 = vmatpush2.msra.mxu0 0.0
        %1045 = vmatprep.subr.mxu0 0.0
        %1046 = vmatpush2.msra.mxu0 0.0
        %1047 = vmatprep.mubr.f32.mxu0 0.0
        %1048 = vmatmul.mubr.f32.gmra.mxu0 %v210
        %v1049 = vpop.f32.mrf.mxu0
        %v1050 = vadd.f32 0.0, %v1049
        %v1051 = vpop.f32.mrf.mxu0
        %1052 = vmatprep.mubr.f32.mxu0 0.0
        %1053 = vmatmul.mubr.f32.gmra.mxu0 %v213
        %v1054 = vpop.f32.mrf.mxu0
        %v1055 = vadd.f32 0.0, %v1054
        %v1056 = vpop.f32.mrf.mxu0
        %1057 = vmatprep.mubr.f32.mxu0 0.0
        %1058 = vmatmul.mubr.f32.gmra.mxu0 %v216
        %v1059 = vpop.f32.mrf.mxu0
        %v1060 = vadd.f32 0.0, %v1059
        %v1061 = vpop.f32.mrf.mxu0
        %1062 = vmatprep.mubr.f32.mxu0 0.0
        %1063 = vmatmul.mubr.f32.gmra.mxu0 %v219
        %v1064 = vpop.f32.mrf.mxu0
        %v1065 = vadd.f32 0.0, %v1064
        %v1066 = vpop.f32.mrf.mxu0
        %1067 = vdwg.mxu0
        %v1068 = vsel %vm208, %v1050, 0.0
        %1069 = vadd.xlane.f32.xlu0 %v1068
        %v1070 = vpop.xlane.xlu0 %1069
        %v1071 = vsel %vm208, %v1055, 0.0
        %1072 = vadd.xlane.f32.xlu0 %v1071
        %v1073 = vpop.xlane.xlu0 %1072
        %v1074 = vsel %vm208, %v1060, 0.0
        %1075 = vadd.xlane.f32.xlu0 %v1074
        %v1076 = vpop.xlane.xlu0 %1075
        %v1077 = vsel %vm208, %v1065, 0.0
        %1078 = vadd.xlane.f32.xlu0 %v1077
        %v1079 = vpop.xlane.xlu0 %1078
        %v1080 = vmul.f32 %v1070, %v318
        %v1081 = vmul.f32 %v1073, %v318
        %v1082 = vmul.f32 %v1076, %v318
        %v1083 = vmul.f32 %v1079, %v318
        %v1084 = vmul.f32 %v1050, %v1050
        %v1085 = vmul.f32 %v1055, %v1055
        %v1086 = vmul.f32 %v1060, %v1060
        %v1087 = vmul.f32 %v1065, %v1065
        %v1088 = vsel %vm208, %v1084, 0.0
        %1089 = vadd.xlane.f32.xlu0 %v1088
        %v1090 = vpop.xlane.xlu0 %1089
        %v1091 = vsel %vm208, %v1085, 0.0
        %1092 = vadd.xlane.f32.xlu0 %v1091
        %v1093 = vpop.xlane.xlu0 %1092
        %v1094 = vsel %vm208, %v1086, 0.0
        %1095 = vadd.xlane.f32.xlu0 %v1094
        %v1096 = vpop.xlane.xlu0 %1095
        %v1097 = vsel %vm208, %v1087, 0.0
        %1098 = vadd.xlane.f32.xlu0 %v1097
        %v1099 = vpop.xlane.xlu0 %1098
        %v1100 = vmul.f32 %v1090, %v318
        %v1101 = vmul.f32 %v1093, %v318
        %v1102 = vmul.f32 %v1096, %v318
        %v1103 = vmul.f32 %v1099, %v318
        %v1104 = vmul.f32 %v1080, %v1080
        %v1105 = vmul.f32 %v1081, %v1081
        %v1106 = vmul.f32 %v1082, %v1082
        %v1107 = vmul.f32 %v1083, %v1083
        %v1108 = vsub.f32 %v1100, %v1104
        %v1109 = vsub.f32 %v1101, %v1105
        %v1110 = vsub.f32 %v1102, %v1106
        %v1111 = vsub.f32 %v1103, %v1107
        %v1112 = vadd.f32 %v1108, 1e-05
        %v1113 = vadd.f32 %v1109, 1e-05
        %v1114 = vadd.f32 %v1110, 1e-05
        %v1115 = vadd.f32 %v1111, 1e-05
        %v1116 = vrsqrt.pop %v1112
        %v1117 = vrsqrt.pop %v1113
        %v1118 = vrsqrt.pop %v1114
        %v1119 = vrsqrt.pop %v1115
        %v1120 = vsub.f32 %v1050, %v1080
        %v1121 = vsub.f32 %v1055, %v1081
        %v1122 = vsub.f32 %v1060, %v1082
        %v1123 = vsub.f32 %v1065, %v1083
        %v1124 = vmul.f32 %v1120, %v1116
        %v1125 = vmul.f32 %v1121, %v1117
        %v1126 = vmul.f32 %v1122, %v1118
        %v1127 = vmul.f32 %v1123, %v1119
        %v1129 = vsel %vm208, %v1124, 0
        %v1132 = vsel %vm208, %v1125, 0
        %v1135 = vsel %vm208, %v1126, 0
        %v1138 = vsel %vm208, %v1127, 0
        %1140 = vmatprep.subr.mxu0 0.0
        %1141 = vmatpush1.msra.mxu0 0.0
        %1142 = vmatprep.subr.mxu0 0.0
        %1143 = vmatpush1.msra.mxu0 0.0
        %1144 = vmatprep.subr.mxu0 0.0
        %1145 = vmatpush1.msra.mxu0 0.0
        %1146 = vmatprep.subr.mxu0 0.0
        %1147 = vmatpush1.msra.mxu0 0.0
        %1148 = vmatprep.subr.mxu0 0.0
        %1149 = vmatpush1.msra.mxu0 0.0
        %1150 = vmatprep.subr.mxu0 0.0
        %1151 = vmatpush1.msra.mxu0 0.0
        %1152 = vmatprep.subr.mxu0 0.0
        %1153 = vmatpush1.msra.mxu0 0.0
        %1154 = vmatprep.subr.mxu0 0.0
        %1155 = vmatpush1.msra.mxu0 0.0
        %1156 = vmatprep.subr.mxu0 0.0
        %1157 = vmatpush1.msra.mxu0 0.0
        %1158 = vmatprep.subr.mxu0 0.0
        %1159 = vmatpush1.msra.mxu0 0.0
        %1160 = vmatprep.subr.mxu0 0.0
        %1161 = vmatpush1.msra.mxu0 0.0
        %1162 = vmatprep.subr.mxu0 0.0
        %1163 = vmatpush1.msra.mxu0 0.0
        %1164 = vmatprep.subr.mxu0 0.0
        %1165 = vmatpush1.msra.mxu0 %v202
        %1166 = vmatprep.subr.mxu0 0.0
        %1167 = vmatpush1.msra.mxu0 %v201
        %1168 = vmatprep.subr.mxu0 0.0
        %1169 = vmatpush1.msra.mxu0 %v200
        %1170 = vmatprep.subr.mxu0 0.0
        %1171 = vmatpush1.msra.mxu0 %v199
        %1172 = vmatprep.subr.mxu0 0.0
        %1173 = vmatpush2.msra.mxu0 0.0
        %1174 = vmatprep.subr.mxu0 0.0
        %1175 = vmatpush2.msra.mxu0 0.0
        %1176 = vmatprep.subr.mxu0 0.0
        %1177 = vmatpush2.msra.mxu0 0.0
        %1178 = vmatprep.subr.mxu0 0.0
        %1179 = vmatpush2.msra.mxu0 0.0
        %1180 = vmatprep.subr.mxu0 0.0
        %1181 = vmatpush2.msra.mxu0 0.0
        %1182 = vmatprep.subr.mxu0 0.0
        %1183 = vmatpush2.msra.mxu0 0.0
        %1184 = vmatprep.subr.mxu0 0.0
        %1185 = vmatpush2.msra.mxu0 0.0
        %1186 = vmatprep.subr.mxu0 0.0
        %1187 = vmatpush2.msra.mxu0 0.0
        %1188 = vmatprep.subr.mxu0 0.0
        %1189 = vmatpush2.msra.mxu0 0.0
        %1190 = vmatprep.subr.mxu0 0.0
        %1191 = vmatpush2.msra.mxu0 0.0
        %1192 = vmatprep.subr.mxu0 0.0
        %1193 = vmatpush2.msra.mxu0 0.0
        %1194 = vmatprep.subr.mxu0 0.0
        %1195 = vmatpush2.msra.mxu0 0.0
        %1196 = vmatprep.subr.mxu0 0.0
        %1197 = vmatpush2.msra.mxu0 0.0
        %1198 = vmatprep.subr.mxu0 0.0
        %1199 = vmatpush2.msra.mxu0 0.0
        %1200 = vmatprep.subr.mxu0 0.0
        %1201 = vmatpush2.msra.mxu0 0.0
        %1202 = vmatprep.subr.mxu0 0.0
        %1203 = vmatpush2.msra.mxu0 0.0
        %1204 = vmatprep.mubr.f32.mxu0 0.0
        %1205 = vmatmul.mubr.f32.gmra.mxu0 %v1129
        %v1206 = vpop.f32.mrf.mxu0
        %v1207 = vadd.f32 %v371, %v1206
        %v1208 = vpop.f32.mrf.mxu0
        %1209 = vmatprep.mubr.f32.mxu0 0.0
        %1210 = vmatmul.mubr.f32.gmra.mxu0 %v1132
        %v1211 = vpop.f32.mrf.mxu0
        %v1212 = vadd.f32 %v371, %v1211
        %v1213 = vpop.f32.mrf.mxu0
        %1214 = vmatprep.mubr.f32.mxu0 0.0
        %1215 = vmatmul.mubr.f32.gmra.mxu0 %v1135
        %v1216 = vpop.f32.mrf.mxu0
        %v1217 = vadd.f32 %v371, %v1216
        %v1218 = vpop.f32.mrf.mxu0
        %1219 = vmatprep.mubr.f32.mxu0 0.0
        %1220 = vmatmul.mubr.f32.gmra.mxu0 %v1138
        %v1221 = vpop.f32.mrf.mxu0
        %v1222 = vadd.f32 %v371, %v1221
        %v1223 = vpop.f32.mrf.mxu0
        %1224 = vdwg.mxu0
        %s1225 = scalar_lea.vmem %s187, 96 [#allocation2]
        %1226 = vst.msk [vmem:[%s1225] sm:$0xff] %vm208, %v1207
        %1227 = vst.msk [vmem:[%s1225 + $0x8] sm:$0xff] %vm208, %v1212
        %1228 = vst.msk [vmem:[%s1225 + $0x10] sm:$0xff] %vm208, %v1217
        %1229 = vst.msk [vmem:[%s1225 + $0x18] sm:$0xff] %vm208, %v1222
        %s1230 = sand.u32 %s112, 1
        %s1231 = sand.u32 %s112, 1
        %s1232 = smul.addr %s1231, 128
        %s1233 = scalar_lea.vmem [#allocation2], %s1232
        // Predicated region
        $region37: #{upsample2d_forward.1} parent=35 // pred_check
          %p1234 = pneg %p122
        $region38: #{upsample2d_forward.1} parent=35 // pred_check_branch
          %1236 = sbr.rel (%p1234) target = $region40
        $region39: #{upsample2d_forward.1} parent=35 // pred_region
          %s1237 = smul.u32 4, %s15
          %s1238 = smul.addr %s1237, 8
          %s1239 = scalar_lea.vmem %s4, %s1238
          // Predicated region
          $region41: #{upsample2d_forward.1} parent=39 // pred_check
            _
          $region42: #{upsample2d_forward.1} parent=39 // pred_check_branch
            %1241 = sbr.rel (0) target = $region44
          $region43: #{upsample2d_forward.1} parent=39 // pred_region
            // Predicated region
            $region45: #{upsample2d_forward.1} parent=43 // pred_check
              _
            $region46: #{upsample2d_forward.1} parent=43 // pred_check_branch
              %1243 = sbr.rel (0) target = $region48
            $region47: #{upsample2d_forward.1} parent=43 // pred_region
              // Predicated region
              $region60: #{upsample2d_forward.1} parent=47 // pred_check
                _
              $region61: #{upsample2d_forward.1} parent=47 // pred_check_branch
                %1289 = sbr.rel (0) target = $region63
              $region62: #{upsample2d_forward.1} parent=47 // pred_region
                loop: start=0, step=1, limit=1
                $region64: #{upsample2d_forward.1} parent=62 // loop_pre_header
                  _
                $region65: #{upsample2d_forward.1} parent=62 // loop_header
                  %s1291 = sphi 0, %s1295
                  %p1292 = scmp.ge.s32.totalorder %s1291, 1
                  %s1296 = sphi %s1233, %s1233
                  %s1297 = sphi %s1239, %s1239
                $region66: #{upsample2d_forward.1} parent=62 // loop_header_branch
                  %1294 = sbr.rel (%p1292) target = $region70
                $region67: #{upsample2d_forward.1} parent=62 // loop_body
                  %v1298 = vld [vmem:[%s1296] sm:$0xff]
                  %1299 = vst [vmem:[%s1297] sm:$0xff] %v1298
                  %v1300 = vld [vmem:[%s1296 + $0x8] sm:$0xff]
                  %1301 = vst [vmem:[%s1297 + $0x8] sm:$0xff] %v1300
                  %v1302 = vld [vmem:[%s1296 + $0x10] sm:$0xff]
                  %1303 = vst [vmem:[%s1297 + $0x10] sm:$0xff] %v1302
                  %v1304 = vld [vmem:[%s1296 + $0x18] sm:$0xff]
                  %1305 = vst [vmem:[%s1297 + $0x18] sm:$0xff] %v1304
                  %v1306 = vld [vmem:[%s1296 + $0x20] sm:$0xff]
                  %1307 = vst [vmem:[%s1297 + $0x40] sm:$0xff] %v1306
                  %v1308 = vld [vmem:[%s1296 + $0x28] sm:$0xff]
                  %1309 = vst [vmem:[%s1297 + $0x48] sm:$0xff] %v1308
                  %v1310 = vld [vmem:[%s1296 + $0x30] sm:$0xff]
                  %1311 = vst [vmem:[%s1297 + $0x50] sm:$0xff] %v1310
                  %v1312 = vld [vmem:[%s1296 + $0x38] sm:$0xff]
                  %1313 = vst [vmem:[%s1297 + $0x58] sm:$0xff] %v1312
                  %v1314 = vld [vmem:[%s1296 + $0x40] sm:$0xff]
                  %1315 = vst [vmem:[%s1297 + $0x80] sm:$0xff] %v1314
                  %v1316 = vld [vmem:[%s1296 + $0x48] sm:$0xff]
                  %1317 = vst [vmem:[%s1297 + $0x88] sm:$0xff] %v1316
                  %v1318 = vld [vmem:[%s1296 + $0x50] sm:$0xff]
                  %1319 = vst [vmem:[%s1297 + $0x90] sm:$0xff] %v1318
                  %v1320 = vld [vmem:[%s1296 + $0x58] sm:$0xff]
                  %1321 = vst [vmem:[%s1297 + $0x98] sm:$0xff] %v1320
                  %v1322 = vld [vmem:[%s1296 + $0x60] sm:$0xff]
                  %1323 = vst [vmem:[%s1297 + $0xc0] sm:$0xff] %v1322
                  %v1324 = vld [vmem:[%s1296 + $0x68] sm:$0xff]
                  %1325 = vst [vmem:[%s1297 + $0xc8] sm:$0xff] %v1324
                  %v1326 = vld [vmem:[%s1296 + $0x70] sm:$0xff]
                  %1327 = vst [vmem:[%s1297 + $0xd0] sm:$0xff] %v1326
                  %v1328 = vld [vmem:[%s1296 + $0x78] sm:$0xff]
                  %1329 = vst [vmem:[%s1297 + $0xd8] sm:$0xff] %v1328
                $region68: #{upsample2d_forward.1} parent=62 // loop_footer
                  %s1295 = sadd.s32 1, %s1291
                $region69: #{upsample2d_forward.1} parent=62 // loop_footer_branch
                  %1290 = sbr.rel target = $region65
                $region70: #{upsample2d_forward.1} parent=62 // loop_exit
                  _
              $region63: #{upsample2d_forward.1} parent=47 // pred_fallthru
                _
              // Predicated region
              $region71: #{upsample2d_forward.1} parent=47 // pred_check
                _
              $region72: #{upsample2d_forward.1} parent=47 // pred_check_branch
                %1331 = sbr.rel target = $region74
              $region73: #{upsample2d_forward.1} parent=47 // pred_region
                _
              $region74: #{upsample2d_forward.1} parent=47 // pred_fallthru
                _
            $region48: #{upsample2d_forward.1} parent=43 // pred_fallthru
              _
            // Predicated region
            $region49: #{upsample2d_forward.1} parent=43 // pred_check
              _
            $region50: #{upsample2d_forward.1} parent=43 // pred_check_branch
              %1245 = sbr.rel target = $region52
            $region51: #{upsample2d_forward.1} parent=43 // pred_region
              %s1247 = ssub.s32 256, 1
              loop: start=0, step=1, limit=1
              $region53: #{upsample2d_forward.1} parent=51 // loop_pre_header
                _
              $region54: #{upsample2d_forward.1} parent=51 // loop_header
                %s1249 = sphi 0, %s1253
                %p1250 = scmp.ge.s32.totalorder %s1249, 1
                %s1254 = sphi %s1233, %s1233
                %s1255 = sphi %s1239, %s1239
              $region55: #{upsample2d_forward.1} parent=51 // loop_header_branch
                %1252 = sbr.rel (%p1250) target = $region59
              $region56: #{upsample2d_forward.1} parent=51 // loop_body
                %v1256 = vld [vmem:[%s1254] sm:%s1247]
                %1257 = vst [vmem:[%s1255] sm:%s1247] %v1256
                %v1258 = vld [vmem:[%s1254 + $0x8] sm:%s1247]
                %1259 = vst [vmem:[%s1255 + $0x8] sm:%s1247] %v1258
                %v1260 = vld [vmem:[%s1254 + $0x10] sm:%s1247]
                %1261 = vst [vmem:[%s1255 + $0x10] sm:%s1247] %v1260
                %v1262 = vld [vmem:[%s1254 + $0x18] sm:%s1247]
                %1263 = vst [vmem:[%s1255 + $0x18] sm:%s1247] %v1262
                %v1264 = vld [vmem:[%s1254 + $0x20] sm:%s1247]
                %1265 = vst [vmem:[%s1255 + $0x40] sm:%s1247] %v1264
                %v1266 = vld [vmem:[%s1254 + $0x28] sm:%s1247]
                %1267 = vst [vmem:[%s1255 + $0x48] sm:%s1247] %v1266
                %v1268 = vld [vmem:[%s1254 + $0x30] sm:%s1247]
                %1269 = vst [vmem:[%s1255 + $0x50] sm:%s1247] %v1268
                %v1270 = vld [vmem:[%s1254 + $0x38] sm:%s1247]
                %1271 = vst [vmem:[%s1255 + $0x58] sm:%s1247] %v1270
                %v1272 = vld [vmem:[%s1254 + $0x40] sm:%s1247]
                %1273 = vst [vmem:[%s1255 + $0x80] sm:%s1247] %v1272
                %v1274 = vld [vmem:[%s1254 + $0x48] sm:%s1247]
                %1275 = vst [vmem:[%s1255 + $0x88] sm:%s1247] %v1274
                %v1276 = vld [vmem:[%s1254 + $0x50] sm:%s1247]
                %1277 = vst [vmem:[%s1255 + $0x90] sm:%s1247] %v1276
                %v1278 = vld [vmem:[%s1254 + $0x58] sm:%s1247]
                %1279 = vst [vmem:[%s1255 + $0x98] sm:%s1247] %v1278
                %v1280 = vld [vmem:[%s1254 + $0x60] sm:%s1247]
                %1281 = vst [vmem:[%s1255 + $0xc0] sm:%s1247] %v1280
                %v1282 = vld [vmem:[%s1254 + $0x68] sm:%s1247]
                %1283 = vst [vmem:[%s1255 + $0xc8] sm:%s1247] %v1282
                %v1284 = vld [vmem:[%s1254 + $0x70] sm:%s1247]
                %1285 = vst [vmem:[%s1255 + $0xd0] sm:%s1247] %v1284
                %v1286 = vld [vmem:[%s1254 + $0x78] sm:%s1247]
                %1287 = vst [vmem:[%s1255 + $0xd8] sm:%s1247] %v1286
              $region57: #{upsample2d_forward.1} parent=51 // loop_footer
                %s1253 = sadd.s32 1, %s1249
              $region58: #{upsample2d_forward.1} parent=51 // loop_footer_branch
                %1248 = sbr.rel target = $region54
              $region59: #{upsample2d_forward.1} parent=51 // loop_exit
                _
            $region52: #{upsample2d_forward.1} parent=43 // pred_fallthru
              _
          $region44: #{upsample2d_forward.1} parent=39 // pred_fallthru
            _
          %1332 = vnop
        $region40: #{upsample2d_forward.1} parent=35 // pred_fallthru
          _
      $region36: #{upsample2d_forward.1} parent=5 // pred_fallthru
        _
      %p1333 = scmp.le.s32.totalorder 2, %s10
      // Predicated region
      $region75: #{upsample2d_forward.1} parent=5 // pred_check
        %p1334 = pneg %p1333
      $region76: #{upsample2d_forward.1} parent=5 // pred_check_branch
        %1336 = sbr.rel (%p1334) target = $region78
      $region77: #{upsample2d_forward.1} parent=5 // pred_region
        %s1337 = ssub.s32 %s10, 2
        // Predicated region
        $region79: #{upsample2d_forward.1} parent=77 // pred_check
          %p1338 = pneg %p128
        $region80: #{upsample2d_forward.1} parent=77 // pred_check_branch
          %1340 = sbr.rel (%p1338) target = $region82
        $region81: #{upsample2d_forward.1} parent=77 // pred_region
          %s1341 = sand.u32 %s113, 1
          %s1342 = sand.u32 %s113, 1
          %s1343 = smul.addr %s1342, 128
          %s1344 = scalar_lea.vmem [#allocation2], %s1343
        $region82: #{upsample2d_forward.1} parent=77 // pred_fallthru
          _
      $region78: #{upsample2d_forward.1} parent=5 // pred_fallthru
        _
    $region6: #{upsample2d_forward.1} parent=1 // loop_footer
      %s14 = sadd.s32 1, %s10
    $region7: #{upsample2d_forward.1} parent=1 // loop_footer_branch
      %9 = sbr.rel target = $region3
    $region8: #{upsample2d_forward.1} parent=1 // loop_exit
      _

</llo_original>
